<compile_context>
chip_gen: v6e
topology: v6e:2x2x1
jax: 0.10.0
libtpu: 0.0.40
codegen_flags: <defaults>
</compile_context>

<pallas_src>
import functools

import jax
import jax.numpy as jnp
from jax import lax
from jax.experimental import pallas as pl
from jax.experimental.pallas import tpu as pltpu


def _round_up(x, m):
    return ((x + m - 1) // m) * m


def _cdiv(a, b):
    return -(-a // b)


def _gelu_tanh(x):
    """tanh-approx GELU (EUP tanh instead of a long VALU erf polynomial)."""
    c = jnp.asarray(0.7978845608028654, x.dtype)   # sqrt(2/pi)
    k = jnp.asarray(0.044715, x.dtype)
    return 0.5 * x * (1.0 + jnp.tanh(c * x * (1.0 + k * x * x)))


def _default_epilogue_dtype():
    """bf16 elementwise epilogue on v6e/v7x; f32 on v5e and older (no bf16 VPU)."""
    try:
        kind = jax.devices()[0].device_kind.lower()
    except Exception:
        return jnp.bfloat16
    if any(tag in kind for tag in ("v2", "v3", "v4", "v5")):
        return jnp.float32
    return jnp.bfloat16


def _choose_row_tiling(n, tm_max=512):
    """Balanced row tiles (multiple of 8, <= tm_max). Prefer an even grid of at
    least 2 tiles so v7x's two TensorCores both get work; balancing tm to
    ~n/num_tiles keeps last-tile padding waste small."""
    n8 = _round_up(max(n, 1), 8)
    num_tiles = max(1, _cdiv(n8, tm_max))
    if num_tiles == 1 and n8 >= 16:
        num_tiles = 2
    elif num_tiles > 1 and num_tiles % 2:
        num_tiles += 1
    tm = _round_up(_cdiv(n8, num_tiles), 8)
    n_pad = tm * num_tiles
    return tm, n_pad, num_tiles


def _mlp_kernel(x_ref, w1_ref, b1_ref, g_ref, beta_ref, w2_ref, b2_ref, o_ref,
                *, inner_true, epilogue_dtype):
    # ---- hidden linear: x @ W1 + b1 (bf16 MXU inputs, f32 accumulation).
    # x arrives in f32 and is cast here (no separate HBM cast pass).
    x = x_ref[...].astype(jnp.bfloat16)
    h = jnp.dot(x, w1_ref[...], preferred_element_type=jnp.float32) + b1_ref[...]

    # ---- LayerNorm statistics over the *true* width (eps=1e-5, torch default).
    # Padded hidden columns of h are exactly zero (zero W1 cols + zero b1), so
    # sum(h) and sum(h*h) over the padded axis are already exact -> no mask.
    inv_n = jnp.float32(1.0 / inner_true)
    mean = jnp.sum(h, axis=-1, keepdims=True) * inv_n
    var = jnp.sum(h * h, axis=-1, keepdims=True) * inv_n - mean * mean
    var = jnp.maximum(var, 0.0)                 # guard E[h^2]-mean^2 cancellation
    rstd = lax.rsqrt(var + 1e-5)

    # ---- elementwise epilogue (normalize, LN affine, GELU) in epilogue_dtype.
    # Padded columns: gamma/beta are zero-padded -> they come out exactly zero,
    # GELU(0)=0 and padded W2 rows are zero, so no contribution to the output.
    hn = ((h - mean) * rstd).astype(epilogue_dtype)
    hn = hn * g_ref[...].astype(epilogue_dtype) + beta_ref[...].astype(epilogue_dtype)
    hn = _gelu_tanh(hn)

    # ---- output linear: h @ W2 + b2 (bf16 MXU, f32 accumulation) ----
    out = jnp.dot(hn.astype(jnp.bfloat16), w2_ref[...],
                  preferred_element_type=jnp.float32) + b2_ref[...]
    o_ref[...] = out.astype(o_ref.dtype)


def prepare_params(params):
    """Pad (lane-dense, exact zero padding) and cast the weights ONCE.
    The returned tuple can be reused across calls (no per-call pad/cast)."""
    w1, b1, gamma, beta, w2, b2 = params
    in_dim, inner_dim = w1.shape
    out_dim = w2.shape[1]
    in_pad = _round_up(in_dim, 128)
    inner_pad = _round_up(inner_dim, 128)
    out_pad = _round_up(out_dim, 128)

    w1p = jnp.pad(w1, ((0, in_pad - in_dim),
                       (0, inner_pad - inner_dim))).astype(jnp.bfloat16)
    w2p = jnp.pad(w2, ((0, inner_pad - inner_dim),
                       (0, out_pad - out_dim))).astype(jnp.bfloat16)
    b1p = jnp.pad(b1.reshape(1, -1), ((0, 0), (0, inner_pad - inner_dim))).astype(jnp.float32)
    gp = jnp.pad(gamma.reshape(1, -1), ((0, 0), (0, inner_pad - inner_dim))).astype(jnp.float32)
    btp = jnp.pad(beta.reshape(1, -1), ((0, 0), (0, inner_pad - inner_dim))).astype(jnp.float32)
    b2p = jnp.pad(b2.reshape(1, -1), ((0, 0), (0, out_pad - out_dim))).astype(jnp.float32)

    dims = (in_dim, inner_dim, out_dim)
    pads = (in_pad, inner_pad, out_pad)
    return (w1p, b1p, gp, btp, w2p, b2p, dims, pads)


def project_mlp_pallas(x2d, prepared, *, tm_max=512,
                       vmem_limit_bytes=48 * 1024 * 1024,
                       epilogue_dtype=None):
    """x2d: (N, in_dim) f32. Returns (N, out_dim) f32."""
    w1p, b1p, gp, btp, w2p, b2p, dims, pads = prepared
    in_dim, inner_dim, out_dim = dims
    in_pad, inner_pad, out_pad = pads
    n = x2d.shape[0]
    if epilogue_dtype is None:
        epilogue_dtype = _default_epilogue_dtype()

    tm, n_pad, num_tiles = _choose_row_tiling(n, tm_max)

    # x stays f32 (in-kernel bf16 cast); zero row/feature padding is exact.
    xp = jnp.pad(x2d, ((0, n_pad - n), (0, in_pad - in_dim))).astype(jnp.float32)

    flops = 2 * n_pad * (in_pad * inner_pad + inner_pad * out_pad)
    transcendentals = n_pad * (inner_pad + 1)   # tanh per hidden elem + rsqrt per row
    bytes_accessed = (xp.size * 4 + w1p.size * 2 + w2p.size * 2
                      + (b1p.size + gp.size + btp.size + b2p.size) * 4
                      + n_pad * out_pad * 4)

    kernel = functools.partial(_mlp_kernel, inner_true=inner_dim,
                               epilogue_dtype=epilogue_dtype)

    def _run(single_buffer_weights):
        if single_buffer_weights:
            # Resident operands (constant index map, fetched once) need only a
            # single VMEM buffer -> frees ~half their VMEM (matters on v7x).
            def resident(shape):
                return pl.BlockSpec(shape, lambda i: (0, 0),
                                    pipeline_mode=pl.Buffered(1))
        else:
            def resident(shape):
                return pl.BlockSpec(shape, lambda i: (0, 0))

        call = pl.pallas_call(
            kernel,
            out_shape=jax.ShapeDtypeStruct((n_pad, out_pad), jnp.float32),
            grid_spec=pltpu.PrefetchScalarGridSpec(
                num_scalar_prefetch=0,
                grid=(num_tiles,),
                in_specs=[
                    pl.BlockSpec((tm, in_pad), lambda i: (i, 0)),   # x row tile (streamed)
                    resident((in_pad, inner_pad)),                  # W1 (resident)
                    resident((1, inner_pad)),                       # b1
                    resident((1, inner_pad)),                       # LN gamma
                    resident((1, inner_pad)),                       # LN beta
                    resident((inner_pad, out_pad)),                 # W2 (resident)
                    resident((1, out_pad)),                         # b2
                ],
                out_specs=pl.BlockSpec((tm, out_pad), lambda i: (i, 0)),
            ),
            compiler_params=pltpu.CompilerParams(
                dimension_semantics=("parallel",),
                vmem_limit_bytes=vmem_limit_bytes),
            cost_estimate=pl.CostEstimate(
                flops=flops,
                transcendentals=transcendentals,
                bytes_accessed=bytes_accessed),
        )
        return jax.block_until_ready(call(xp, w1p, b1p, gp, btp, w2p, b2p))

    try:
        out = _run(True)
    except Exception:
        # Fallback for Pallas versions that reject pipeline_mode=Buffered(1)
        # on the top-level grid pipeline; correctness is unaffected.
        out = _run(False)
    return out[:n, :out_dim]


def project_mlp(x, prepared):
    """x: (B, L, in_dim) or (B, in_dim). Applies Linear -> LayerNorm -> GELU ->
    Linear on the last axis, matching ProjectMLP(num_layers=2).forward."""
    in_dim, _, out_dim = prepared[6]
    x2d = x.reshape(-1, in_dim)
    out2d = project_mlp_pallas(x2d, prepared)
    return out2d.reshape(x.shape[:-1] + (out_dim,))


def init_params(key, in_dim, inner_dim, out_dim):
    """Synthetic init mirroring the PyTorch module's shapes.
    Linear weights are stored transposed: (in, out)."""
    k1, k2, k3, k4 = jax.random.split(key, 4)
    s1 = 1.0 / jnp.sqrt(in_dim)
    s2 = 1.0 / jnp.sqrt(inner_dim)
    w1 = jax.random.uniform(k1, (in_dim, inner_dim), jnp.float32, -s1, s1)
    b1 = jax.random.uniform(k2, (1, inner_dim), jnp.float32, -s1, s1)
    gamma = jnp.ones((1, inner_dim), jnp.float32)   # LayerNorm weight
    beta = jnp.zeros((1, inner_dim), jnp.float32)   # LayerNorm bias
    w2 = jax.random.uniform(k3, (inner_dim, out_dim), jnp.float32, -s2, s2)
    b2 = jax.random.uniform(k4, (1, out_dim), jnp.float32, -s2, s2)
    return (w1, b1, gamma, beta, w2, b2)


def _reference_f32(x, params):
    """Pure-JAX full-f32 module reference (torch-default erf GELU)."""
    w1, b1, gamma, beta, w2, b2 = params
    h = x @ w1 + b1
    mean = jnp.mean(h, axis=-1, keepdims=True)
    var = jnp.mean((h - mean) ** 2, axis=-1, keepdims=True)
    h = (h - mean) * lax.rsqrt(var + 1e-5)
    h = h * gamma + beta
    h = 0.5 * h * (1.0 + lax.erf(h * 0.7071067811865476))
    return h @ w2 + b2


def _reference_matched(x, params, epilogue_dtype):
    """Pure-JAX reference mirroring the kernel's numerics (bf16 MXU inputs,
    f32 stats, epilogue dtype, tanh GELU)."""
    w1, b1, gamma, beta, w2, b2 = params
    h = jnp.dot(x.astype(jnp.bfloat16), w1.astype(jnp.bfloat16),
                preferred_element_type=jnp.float32) + b1
    mean = jnp.mean(h, axis=-1, keepdims=True)
    var = jnp.maximum(jnp.mean(h * h, axis=-1, keepdims=True) - mean * mean, 0.0)
    rstd = lax.rsqrt(var + 1e-5)
    hn = ((h - mean) * rstd).astype(epilogue_dtype)
    hn = hn * gamma.astype(epilogue_dtype) + beta.astype(epilogue_dtype)
    hn = _gelu_tanh(hn)
    return jnp.dot(hn.astype(jnp.bfloat16), w2.astype(jnp.bfloat16),
                   preferred_element_type=jnp.float32) + b2


if __name__ == "__main__":
    # Small shapes consistent with forward(): x of shape [B, L, C]
    # (scaled-down versions of in=256 / inner=4096 / out=256, lane-dense dims)
    B, L = 2, 8
    in_dim, inner_dim, out_dim = 128, 256, 128

    key = jax.random.PRNGKey(0)
    kx, kp = jax.random.split(key)
    x = jax.random.normal(kx, (B, L, in_dim), jnp.float32)
    params = init_params(kp, in_dim, inner_dim, out_dim)

    prepared = prepare_params(params)     # pad/cast weights once, reuse per call
    out = project_mlp(x, prepared)
    out = jax.block_until_ready(out)
    assert out.shape == (B, L, out_dim)

    # check against a reference with matched (bf16 MXU / epilogue / tanh) numerics
    ep_dt = _default_epilogue_dtype()
    ref_m = _reference_matched(x, params, ep_dt)
    assert jnp.allclose(out, ref_m, atol=2e-2, rtol=2e-2), \
        float(jnp.max(jnp.abs(out - ref_m)))

    # semantics check against the full-f32 module reference (bf16 matmuls,
    # bf16 epilogue and tanh-GELU introduce ~1e-2-level deviation)
    ref_f = _reference_f32(x, params)
    assert jnp.allclose(out, ref_f, atol=6e-2, rtol=6e-2), \
        float(jnp.max(jnp.abs(out - ref_f)))

    print("KERNEL_OK")
</pallas_src>

<mosaic_0001>
module attributes {stable_mosaic.version = 11 : i64} {
  func.func @_mlp_kernel(%arg0: i32, %arg1: memref<8x128xf32, #tpu.memory_space<vmem>>, %arg2: memref<128x256xbf16, #tpu.memory_space<vmem>>, %arg3: memref<1x256xf32, #tpu.memory_space<vmem>>, %arg4: memref<1x256xf32, #tpu.memory_space<vmem>>, %arg5: memref<1x256xf32, #tpu.memory_space<vmem>>, %arg6: memref<256x128xbf16, #tpu.memory_space<vmem>>, %arg7: memref<1x128xf32, #tpu.memory_space<vmem>>, %arg8: memref<8x128xf32, #tpu.memory_space<vmem>>) attributes {dimension_semantics = [#tpu.dimension_semantics<parallel>], iteration_bounds = array<i64: 2>, scalar_prefetch = 0 : i64, scratch_operands = 0 : i64, tpu.core_type = #tpu.core_type<tc>, window_params = [{transform_indices = @transform_0, window_bounds = array<i64: 8, 128>}, {pipeline_mode = #tpu.pipeline_mode<synchronous>, transform_indices = @transform_1, window_bounds = array<i64: 128, 256>}, {pipeline_mode = #tpu.pipeline_mode<synchronous>, transform_indices = @transform_2, window_bounds = array<i64: 1, 256>}, {pipeline_mode = #tpu.pipeline_mode<synchronous>, transform_indices = @transform_3, window_bounds = array<i64: 1, 256>}, {pipeline_mode = #tpu.pipeline_mode<synchronous>, transform_indices = @transform_4, window_bounds = array<i64: 1, 256>}, {pipeline_mode = #tpu.pipeline_mode<synchronous>, transform_indices = @transform_5, window_bounds = array<i64: 256, 128>}, {pipeline_mode = #tpu.pipeline_mode<synchronous>, transform_indices = @transform_6, window_bounds = array<i64: 1, 128>}, {transform_indices = @transform_7, window_bounds = array<i64: 8, 128>}]} {
    %c0 = arith.constant 0 : index
    %c0_0 = arith.constant 0 : index
    %0 = vector.load %arg1[%c0, %c0_0] : memref<8x128xf32, #tpu.memory_space<vmem>>, vector<8x128xf32>
    %1 = arith.truncf %0 : vector<8x128xf32> to vector<8x128xbf16>
    %c0_1 = arith.constant 0 : index
    %c0_2 = arith.constant 0 : index
    %2 = vector.load %arg2[%c0_1, %c0_2] : memref<128x256xbf16, #tpu.memory_space<vmem>>, vector<128x256xbf16>
    %cst = arith.constant dense<0.000000e+00> : vector<8x256xf32>
    %3 = tpu.matmul %1, %2, %cst {dimension_numbers = #tpu.dot_dimension_numbers<[1], [0], [0], [1], [0, 0, 1, 1], [], []>} : vector<8x128xbf16>, vector<128x256xbf16>, vector<8x256xf32> -> vector<8x256xf32>
    %c0_3 = arith.constant 0 : index
    %c0_4 = arith.constant 0 : index
    %4 = vector.load %arg3[%c0_3, %c0_4] : memref<1x256xf32, #tpu.memory_space<vmem>>, vector<1x256xf32>
    %5 = vector.broadcast %4 : vector<1x256xf32> to vector<8x256xf32>
    %6 = arith.addf %3, %5 : vector<8x256xf32>
    %cst_5 = arith.constant dense<0.000000e+00> : vector<8xf32>
    %7 = vector.multi_reduction <add>, %6, %cst_5 [1] : vector<8x256xf32> to vector<8xf32>
    %8 = vector.shape_cast %7 : vector<8xf32> to vector<8x1xf32>
    %cst_6 = arith.constant 3.906250e-03 : f32
    %9 = vector.broadcast %cst_6 : f32 to vector<8x1xf32>
    %10 = arith.mulf %8, %9 : vector<8x1xf32>
    %11 = arith.mulf %6, %6 : vector<8x256xf32>
    %cst_7 = arith.constant dense<0.000000e+00> : vector<8xf32>
    %12 = vector.multi_reduction <add>, %11, %cst_7 [1] : vector<8x256xf32> to vector<8xf32>
    %13 = vector.shape_cast %12 : vector<8xf32> to vector<8x1xf32>
    %cst_8 = arith.constant 3.906250e-03 : f32
    %14 = vector.broadcast %cst_8 : f32 to vector<8x1xf32>
    %15 = arith.mulf %13, %14 : vector<8x1xf32>
    %16 = arith.mulf %10, %10 : vector<8x1xf32>
    %17 = arith.subf %15, %16 : vector<8x1xf32>
    %cst_9 = arith.constant 0.000000e+00 : f32
    %18 = vector.broadcast %cst_9 : f32 to vector<8x1xf32>
    %19 = arith.maximumf %17, %18 : vector<8x1xf32>
    %cst_10 = arith.constant 9.99999974E-6 : f32
    %20 = vector.broadcast %cst_10 : f32 to vector<8x1xf32>
    %21 = arith.addf %19, %20 : vector<8x1xf32>
    %22 = math.rsqrt %21 : vector<8x1xf32>
    %23 = vector.broadcast %10 : vector<8x1xf32> to vector<8x256xf32>
    %24 = arith.subf %6, %23 : vector<8x256xf32>
    %25 = vector.broadcast %22 : vector<8x1xf32> to vector<8x256xf32>
    %26 = arith.mulf %24, %25 : vector<8x256xf32>
    %27 = arith.truncf %26 : vector<8x256xf32> to vector<8x256xbf16>
    %c0_11 = arith.constant 0 : index
    %c0_12 = arith.constant 0 : index
    %28 = vector.load %arg4[%c0_11, %c0_12] : memref<1x256xf32, #tpu.memory_space<vmem>>, vector<1x256xf32>
    %29 = arith.truncf %28 : vector<1x256xf32> to vector<1x256xbf16>
    %30 = vector.broadcast %29 : vector<1x256xbf16> to vector<8x256xbf16>
    %31 = arith.mulf %27, %30 : vector<8x256xbf16>
    %c0_13 = arith.constant 0 : index
    %c0_14 = arith.constant 0 : index
    %32 = vector.load %arg5[%c0_13, %c0_14] : memref<1x256xf32, #tpu.memory_space<vmem>>, vector<1x256xf32>
    %33 = arith.truncf %32 : vector<1x256xf32> to vector<1x256xbf16>
    %34 = vector.broadcast %33 : vector<1x256xbf16> to vector<8x256xbf16>
    %35 = arith.addf %31, %34 : vector<8x256xbf16>
    %cst_15 = arith.constant 5.000000e-01 : bf16
    %36 = vector.broadcast %cst_15 : bf16 to vector<8x256xbf16>
    %37 = arith.mulf %36, %35 : vector<8x256xbf16>
    %cst_16 = arith.constant 7.968750e-01 : bf16
    %38 = vector.broadcast %cst_16 : bf16 to vector<8x256xbf16>
    %39 = arith.mulf %38, %35 : vector<8x256xbf16>
    %cst_17 = arith.constant 4.467770e-02 : bf16
    %40 = vector.broadcast %cst_17 : bf16 to vector<8x256xbf16>
    %41 = arith.mulf %40, %35 : vector<8x256xbf16>
    %42 = arith.mulf %41, %35 : vector<8x256xbf16>
    %cst_18 = arith.constant 1.000000e+00 : bf16
    %43 = vector.broadcast %cst_18 : bf16 to vector<8x256xbf16>
    %44 = arith.addf %43, %42 : vector<8x256xbf16>
    %45 = arith.mulf %39, %44 : vector<8x256xbf16>
    %46 = math.tanh %45 : vector<8x256xbf16>
    %cst_19 = arith.constant 1.000000e+00 : bf16
    %47 = vector.broadcast %cst_19 : bf16 to vector<8x256xbf16>
    %48 = arith.addf %47, %46 : vector<8x256xbf16>
    %49 = arith.mulf %37, %48 : vector<8x256xbf16>
    %c0_20 = arith.constant 0 : index
    %c0_21 = arith.constant 0 : index
    %50 = vector.load %arg6[%c0_20, %c0_21] : memref<256x128xbf16, #tpu.memory_space<vmem>>, vector<256x128xbf16>
    %cst_22 = arith.constant dense<0.000000e+00> : vector<8x128xf32>
    %51 = tpu.matmul %49, %50, %cst_22 {dimension_numbers = #tpu.dot_dimension_numbers<[1], [0], [0], [1], [0, 0, 1, 1], [], []>} : vector<8x256xbf16>, vector<256x128xbf16>, vector<8x128xf32> -> vector<8x128xf32>
    %c0_23 = arith.constant 0 : index
    %c0_24 = arith.constant 0 : index
    %52 = vector.load %arg7[%c0_23, %c0_24] : memref<1x128xf32, #tpu.memory_space<vmem>>, vector<1x128xf32>
    %53 = vector.broadcast %52 : vector<1x128xf32> to vector<8x128xf32>
    %54 = arith.addf %51, %53 : vector<8x128xf32>
    %c0_25 = arith.constant 0 : index
    %c0_26 = arith.constant 0 : index
    %55 = vector.load %arg8[%c0_25, %c0_26] : memref<8x128xf32, #tpu.memory_space<vmem>>, vector<8x128xf32>
    tpu.vector_store %arg8[%c0_25, %c0_26], %54 {strides = array<i32>} : memref<8x128xf32, #tpu.memory_space<vmem>>, vector<8x128xf32>,
    return
  }
  func.func @transform_0(%arg0: i32) -> (i32, i32) {
    %c0_i32 = arith.constant 0 : i32
    %c0_i32_0 = arith.constant 0 : i32
    return %arg0, %c0_i32 : i32, i32
  }
  func.func @transform_1(%arg0: i32) -> (i32, i32) {
    %c0_i32 = arith.constant 0 : i32
    %c0_i32_0 = arith.constant 0 : i32
    %c0_i32_1 = arith.constant 0 : i32
    return %c0_i32, %c0_i32_0 : i32, i32
  }
  func.func @transform_2(%arg0: i32) -> (i32, i32) {
    %c0_i32 = arith.constant 0 : i32
    %c0_i32_0 = arith.constant 0 : i32
    %c0_i32_1 = arith.constant 0 : i32
    return %c0_i32, %c0_i32_0 : i32, i32
  }
  func.func @transform_3(%arg0: i32) -> (i32, i32) {
    %c0_i32 = arith.constant 0 : i32
    %c0_i32_0 = arith.constant 0 : i32
    %c0_i32_1 = arith.constant 0 : i32
    return %c0_i32, %c0_i32_0 : i32, i32
  }
  func.func @transform_4(%arg0: i32) -> (i32, i32) {
    %c0_i32 = arith.constant 0 : i32
    %c0_i32_0 = arith.constant 0 : i32
    %c0_i32_1 = arith.constant 0 : i32
    return %c0_i32, %c0_i32_0 : i32, i32
  }
  func.func @transform_5(%arg0: i32) -> (i32, i32) {
    %c0_i32 = arith.constant 0 : i32
    %c0_i32_0 = arith.constant 0 : i32
    %c0_i32_1 = arith.constant 0 : i32
    return %c0_i32, %c0_i32_0 : i32, i32
  }
  func.func @transform_6(%arg0: i32) -> (i32, i32) {
    %c0_i32 = arith.constant 0 : i32
    %c0_i32_0 = arith.constant 0 : i32
    %c0_i32_1 = arith.constant 0 : i32
    return %c0_i32, %c0_i32_0 : i32, i32
  }
  func.func @transform_7(%arg0: i32) -> (i32, i32) {
    %c0_i32 = arith.constant 0 : i32
    %c0_i32_0 = arith.constant 0 : i32
    return %arg0, %c0_i32 : i32, i32
  }
}

module attributes {stable_mosaic.version = 11 : i64} {
  func.func @_mlp_kernel(%arg0: i32, %arg1: memref<8x128xf32, #tpu.memory_space<vmem>>, %arg2: memref<128x256xbf16, #tpu.memory_space<vmem>>, %arg3: memref<1x256xf32, #tpu.memory_space<vmem>>, %arg4: memref<1x256xf32, #tpu.memory_space<vmem>>, %arg5: memref<1x256xf32, #tpu.memory_space<vmem>>, %arg6: memref<256x128xbf16, #tpu.memory_space<vmem>>, %arg7: memref<1x128xf32, #tpu.memory_space<vmem>>, %arg8: memref<8x128xf32, #tpu.memory_space<vmem>>) attributes {dimension_semantics = [#tpu.dimension_semantics<parallel>], iteration_bounds = array<i64: 2>, scalar_prefetch = 0 : i64, scratch_operands = 0 : i64, tpu.core_type = #tpu.core_type<tc>, window_params = [{transform_indices = @transform_0, window_bounds = array<i64: 8, 128>}, {pipeline_mode = #tpu.pipeline_mode<synchronous>, transform_indices = @transform_1, window_bounds = array<i64: 128, 256>}, {pipeline_mode = #tpu.pipeline_mode<synchronous>, transform_indices = @transform_2, window_bounds = array<i64: 1, 256>}, {pipeline_mode = #tpu.pipeline_mode<synchronous>, transform_indices = @transform_3, window_bounds = array<i64: 1, 256>}, {pipeline_mode = #tpu.pipeline_mode<synchronous>, transform_indices = @transform_4, window_bounds = array<i64: 1, 256>}, {pipeline_mode = #tpu.pipeline_mode<synchronous>, transform_indices = @transform_5, window_bounds = array<i64: 256, 128>}, {pipeline_mode = #tpu.pipeline_mode<synchronous>, transform_indices = @transform_6, window_bounds = array<i64: 1, 128>}, {transform_indices = @transform_7, window_bounds = array<i64: 8, 128>}]} {
    %c0 = arith.constant 0 : index
    %c0_0 = arith.constant 0 : index
    %0 = vector.load %arg1[%c0, %c0_0] : memref<8x128xf32, #tpu.memory_space<vmem>>, vector<8x128xf32>
    %1 = arith.truncf %0 : vector<8x128xf32> to vector<8x128xbf16>
    %c0_1 = arith.constant 0 : index
    %c0_2 = arith.constant 0 : index
    %2 = vector.load %arg2[%c0_1, %c0_2] : memref<128x256xbf16, #tpu.memory_space<vmem>>, vector<128x256xbf16>
    %cst = arith.constant dense<0.000000e+00> : vector<8x256xf32>
    %3 = tpu.matmul %1, %2, %cst {dimension_numbers = #tpu.dot_dimension_numbers<[1], [0], [0], [1], [0, 0, 1, 1], [], []>} : vector<8x128xbf16>, vector<128x256xbf16>, vector<8x256xf32> -> vector<8x256xf32>
    %c0_3 = arith.constant 0 : index
    %c0_4 = arith.constant 0 : index
    %4 = vector.load %arg3[%c0_3, %c0_4] : memref<1x256xf32, #tpu.memory_space<vmem>>, vector<1x256xf32>
    %5 = vector.broadcast %4 : vector<1x256xf32> to vector<8x256xf32>
    %6 = arith.addf %3, %5 : vector<8x256xf32>
    %cst_5 = arith.constant dense<0.000000e+00> : vector<8xf32>
    %7 = vector.multi_reduction <add>, %6, %cst_5 [1] : vector<8x256xf32> to vector<8xf32>
    %8 = vector.shape_cast %7 : vector<8xf32> to vector<8x1xf32>
    %cst_6 = arith.constant 3.906250e-03 : f32
    %9 = vector.broadcast %cst_6 : f32 to vector<8x1xf32>
    %10 = arith.mulf %8, %9 : vector<8x1xf32>
    %11 = arith.mulf %6, %6 : vector<8x256xf32>
    %cst_7 = arith.constant dense<0.000000e+00> : vector<8xf32>
    %12 = vector.multi_reduction <add>, %11, %cst_7 [1] : vector<8x256xf32> to vector<8xf32>
    %13 = vector.shape_cast %12 : vector<8xf32> to vector<8x1xf32>
    %cst_8 = arith.constant 3.906250e-03 : f32
    %14 = vector.broadcast %cst_8 : f32 to vector<8x1xf32>
    %15 = arith.mulf %13, %14 : vector<8x1xf32>
    %16 = arith.mulf %10, %10 : vector<8x1xf32>
    %17 = arith.subf %15, %16 : vector<8x1xf32>
    %cst_9 = arith.constant 0.000000e+00 : f32
    %18 = vector.broadcast %cst_9 : f32 to vector<8x1xf32>
    %19 = arith.maximumf %17, %18 : vector<8x1xf32>
    %cst_10 = arith.constant 9.99999974E-6 : f32
    %20 = vector.broadcast %cst_10 : f32 to vector<8x1xf32>
    %21 = arith.addf %19, %20 : vector<8x1xf32>
    %22 = math.rsqrt %21 : vector<8x1xf32>
    %23 = vector.broadcast %10 : vector<8x1xf32> to vector<8x256xf32>
    %24 = arith.subf %6, %23 : vector<8x256xf32>
    %25 = vector.broadcast %22 : vector<8x1xf32> to vector<8x256xf32>
    %26 = arith.mulf %24, %25 : vector<8x256xf32>
    %27 = arith.truncf %26 : vector<8x256xf32> to vector<8x256xbf16>
    %c0_11 = arith.constant 0 : index
    %c0_12 = arith.constant 0 : index
    %28 = vector.load %arg4[%c0_11, %c0_12] : memref<1x256xf32, #tpu.memory_space<vmem>>, vector<1x256xf32>
    %29 = arith.truncf %28 : vector<1x256xf32> to vector<1x256xbf16>
    %30 = vector.broadcast %29 : vector<1x256xbf16> to vector<8x256xbf16>
    %31 = arith.mulf %27, %30 : vector<8x256xbf16>
    %c0_13 = arith.constant 0 : index
    %c0_14 = arith.constant 0 : index
    %32 = vector.load %arg5[%c0_13, %c0_14] : memref<1x256xf32, #tpu.memory_space<vmem>>, vector<1x256xf32>
    %33 = arith.truncf %32 : vector<1x256xf32> to vector<1x256xbf16>
    %34 = vector.broadcast %33 : vector<1x256xbf16> to vector<8x256xbf16>
    %35 = arith.addf %31, %34 : vector<8x256xbf16>
    %cst_15 = arith.constant 5.000000e-01 : bf16
    %36 = vector.broadcast %cst_15 : bf16 to vector<8x256xbf16>
    %37 = arith.mulf %36, %35 : vector<8x256xbf16>
    %cst_16 = arith.constant 7.968750e-01 : bf16
    %38 = vector.broadcast %cst_16 : bf16 to vector<8x256xbf16>
    %39 = arith.mulf %38, %35 : vector<8x256xbf16>
    %cst_17 = arith.constant 4.467770e-02 : bf16
    %40 = vector.broadcast %cst_17 : bf16 to vector<8x256xbf16>
    %41 = arith.mulf %40, %35 : vector<8x256xbf16>
    %42 = arith.mulf %41, %35 : vector<8x256xbf16>
    %cst_18 = arith.constant 1.000000e+00 : bf16
    %43 = vector.broadcast %cst_18 : bf16 to vector<8x256xbf16>
    %44 = arith.addf %43, %42 : vector<8x256xbf16>
    %45 = arith.mulf %39, %44 : vector<8x256xbf16>
    %46 = math.tanh %45 : vector<8x256xbf16>
    %cst_19 = arith.constant 1.000000e+00 : bf16
    %47 = vector.broadcast %cst_19 : bf16 to vector<8x256xbf16>
    %48 = arith.addf %47, %46 : vector<8x256xbf16>
    %49 = arith.mulf %37, %48 : vector<8x256xbf16>
    %c0_20 = arith.constant 0 : index
    %c0_21 = arith.constant 0 : index
    %50 = vector.load %arg6[%c0_20, %c0_21] : memref<256x128xbf16, #tpu.memory_space<vmem>>, vector<256x128xbf16>
    %cst_22 = arith.constant dense<0.000000e+00> : vector<8x128xf32>
    %51 = tpu.matmul %49, %50, %cst_22 {dimension_numbers = #tpu.dot_dimension_numbers<[1], [0], [0], [1], [0, 0, 1, 1], [], []>} : vector<8x256xbf16>, vector<256x128xbf16>, vector<8x128xf32> -> vector<8x128xf32>
    %c0_23 = arith.constant 0 : index
    %c0_24 = arith.constant 0 : index
    %52 = vector.load %arg7[%c0_23, %c0_24] : memref<1x128xf32, #tpu.memory_space<vmem>>, vector<1x128xf32>
    %53 = vector.broadcast %52 : vector<1x128xf32> to vector<8x128xf32>
    %54 = arith.addf %51, %53 : vector<8x128xf32>
    %c0_25 = arith.constant 0 : index
    %c0_26 = arith.constant 0 : index
    %55 = vector.load %arg8[%c0_25, %c0_26] : memref<8x128xf32, #tpu.memory_space<vmem>>, vector<8x128xf32>
    tpu.vector_store %arg8[%c0_25, %c0_26], %54 {strides = array<i32>} : memref<8x128xf32, #tpu.memory_space<vmem>>, vector<8x128xf32>,
    return
  }
  func.func @transform_0(%arg0: i32) -> (i32, i32) {
    %c0_i32 = arith.constant 0 : i32
    %c0_i32_0 = arith.constant 0 : i32
    return %arg0, %c0_i32 : i32, i32
  }
  func.func @transform_1(%arg0: i32) -> (i32, i32) {
    %c0_i32 = arith.constant 0 : i32
    %c0_i32_0 = arith.constant 0 : i32
    %c0_i32_1 = arith.constant 0 : i32
    return %c0_i32, %c0_i32_0 : i32, i32
  }
  func.func @transform_2(%arg0: i32) -> (i32, i32) {
    %c0_i32 = arith.constant 0 : i32
    %c0_i32_0 = arith.constant 0 : i32
    %c0_i32_1 = arith.constant 0 : i32
    return %c0_i32, %c0_i32_0 : i32, i32
  }
  func.func @transform_3(%arg0: i32) -> (i32, i32) {
    %c0_i32 = arith.constant 0 : i32
    %c0_i32_0 = arith.constant 0 : i32
    %c0_i32_1 = arith.constant 0 : i32
    return %c0_i32, %c0_i32_0 : i32, i32
  }
  func.func @transform_4(%arg0: i32) -> (i32, i32) {
    %c0_i32 = arith.constant 0 : i32
    %c0_i32_0 = arith.constant 0 : i32
    %c0_i32_1 = arith.constant 0 : i32
    return %c0_i32, %c0_i32_0 : i32, i32
  }
  func.func @transform_5(%arg0: i32) -> (i32, i32) {
    %c0_i32 = arith.constant 0 : i32
    %c0_i32_0 = arith.constant 0 : i32
    %c0_i32_1 = arith.constant 0 : i32
    return %c0_i32, %c0_i32_0 : i32, i32
  }
  func.func @transform_6(%arg0: i32) -> (i32, i32) {
    %c0_i32 = arith.constant 0 : i32
    %c0_i32_0 = arith.constant 0 : i32
    %c0_i32_1 = arith.constant 0 : i32
    return %c0_i32, %c0_i32_0 : i32, i32
  }
  func.func @transform_7(%arg0: i32) -> (i32, i32) {
    %c0_i32 = arith.constant 0 : i32
    %c0_i32_0 = arith.constant 0 : i32
    return %arg0, %c0_i32 : i32, i32
  }
}

</mosaic_0001>

<llo_original>
// kernel: tpu_custom_call.1
$region0: #{tpu_custom_call.1}
  #allocation0 [shape = 'u32[]', space=smem, size = 0x4, offset = 0x4, fixed_abs, tag = 'smem constant byte address 0x4 - core index']
  #allocation1 [shape = 'u32[144,128]{1,0:T(1,128)}', space=vmem, size = 0x12000, scoped, tag = 'internal scratch']
  %s0 = inlined_call_operand.hbm [shape: f32[16,128], index: 0, kind: input, shape index: {}]
  %s1 = inlined_call_operand.hbm [shape: bf16[128,256], index: 1, kind: input, shape index: {}]
  %s2 = inlined_call_operand.vmem [shape: f32[1,256], index: 2, kind: input, shape index: {}]
  %s3 = inlined_call_operand.vmem [shape: f32[1,256], index: 3, kind: input, shape index: {}]
  %s4 = inlined_call_operand.vmem [shape: f32[1,256], index: 4, kind: input, shape index: {}]
  %s5 = inlined_call_operand.hbm [shape: bf16[256,128], index: 5, kind: input, shape index: {}]
  %s6 = inlined_call_operand.vmem [shape: f32[1,128], index: 6, kind: input, shape index: {}]
  %s7 = inlined_call_operand.hbm [shape: f32[16,128], index: 7, kind: output, shape index: {}]
  %s8 = sld [smem:[#allocation0]]
  $region73: #{tpu_custom_call.1} parent=0
    _
  %s10 = ssub.s32 1, %s8
  %s11 = scalar_select 0, %s10, %s8
  $region1: #{tpu_custom_call.1} parent=0
    #allocation2 [shape = 'u8[8192]{0}', space=vmem, size = 0x2000, scoped, tag = 'input window, operand 0']
    #allocation3 [shape = 's32[2]{0}', space=sflag, size = 0x8, scoped, tag = 'scoped memory for tpu_custom_call.1']
    #allocation4 [shape = 's32[2]{0}', space=sflag, size = 0x8, scoped, tag = 'scoped memory for tpu_custom_call.1']
    #allocation5 [shape = 'u8[65536]{0}', space=vmem, size = 0x10000, scoped, tag = 'input window, operand 1, single buffered']
    #allocation6 [shape = 's32[1]{0}', space=sflag, size = 0x4, scoped, tag = 'scoped memory for tpu_custom_call.1']
    #allocation7 [shape = 'u8[65536]{0}', space=vmem, size = 0x10000, scoped, tag = 'input window, operand 5, single buffered']
    #allocation8 [shape = 'u8[8192]{0}', space=vmem, size = 0x2000, scoped, tag = 'output window, operand 0']
    %12 = vsyncpa [#allocation3], 0
    %s13 = scalar_lea.sflag [#allocation3], 1
    %14 = vsyncpa %s13, 0
    %15 = vsyncpa [#allocation6], 0
    %16 = vsyncpa [#allocation4], 0
    %s17 = scalar_lea.sflag [#allocation4], 1
    %18 = vsyncpa %s17, 0
    loop: start=0, step=1, limit=4
    $region2: #{tpu_custom_call.1} parent=1 // loop_pre_header
      _
    $region3: #{tpu_custom_call.1} parent=1 // loop_header
      %s20 = sphi 0, %s24
      %p21 = scmp.ge.s32.totalorder %s20, 4
      %s30 = sphi 0, %s32
      %s33 = sphi 0, %s30
      %s34 = sphi 0, %s33
      %s50 = sphi 0, %s34
      %s54 = sphi 0, %s54
      %s56 = sphi 0, %s54
      %s57 = sphi 0, %s56
      %s71 = sphi 0, %s57
      %s75 = sphi 0, %s75
      %s77 = sphi 0, %s75
      %s78 = sphi 0, %s77
      %s92 = sphi 0, %s78
      %s96 = sphi 0, %s96
      %s98 = sphi 0, %s96
      %s99 = sphi 0, %s98
      %s113 = sphi 0, %s99
      %s117 = sphi 0, %s117
      %s119 = sphi 0, %s117
      %s120 = sphi 0, %s119
      %s134 = sphi 0, %s120
      %s138 = sphi 0, %s138
      %s140 = sphi 0, %s138
      %s141 = sphi 0, %s140
      %s155 = sphi 0, %s141
      %s159 = sphi 0, %s159
      %s161 = sphi 0, %s159
      %s162 = sphi 0, %s161
      %s176 = sphi 0, %s162
      %s182 = sphi 0, %s184
      %s185 = sphi 0, %s182
      %s186 = sphi 0, %s185
      %s202 = sphi 0, %s186
    $region4: #{tpu_custom_call.1} parent=1 // loop_header_branch
      %23 = sbr.rel (%p21) target = $region8
    $region5: #{tpu_custom_call.1} parent=1 // loop_body
      %s25 = ssub.s32 %s20, 1
      %s26 = ssub.s32 %s20, 2
      %s27 = sadd.s32 %s20, 1
      %s28 = ssub.s32 %s20, %s27
      %p29 = scmp.eq.s32.totalorder %s28, 0
      %s31 = sadd.s32 %s30, 1
      %s32 = scalar_select %p29, %s30, %s31
      %p35 = pneg %p29
      %p36 = scmp.eq.s32.totalorder %s20, 1
      %p37 = por %p35, %p36
      %p38 = scmp.ne.s32.totalorder %s30, %s33
      %p39 = scmp.eq.s32.totalorder %s20, 0
      %p40 = por %p38, %p39
      %p41 = scmp.ne.s32.totalorder %s30, %s33
      %p42 = scmp.eq.s32.totalorder %s25, 1
      %p43 = por %p41, %p42
      %p44 = scmp.ne.s32.totalorder %s33, %s34
      %p45 = scmp.eq.s32.totalorder %s25, 0
      %p46 = por %p44, %p45
      %p47 = scmp.ne.s32.totalorder %s33, %s34
      %p48 = scmp.eq.s32.totalorder %s26, 1
      %p49 = por %p47, %p48
      %p51 = scmp.ne.s32.totalorder %s34, %s50
      %p52 = scmp.eq.s32.totalorder %s26, 0
      %p53 = por %p51, %p52
      %s55 = sadd.s32 %s54, 1
      %p58 = scmp.eq.s32.totalorder %s20, 1
      %p59 = scmp.ne.s32.totalorder %s54, %s56
      %p60 = scmp.eq.s32.totalorder %s20, 0
      %p61 = por %p59, %p60
      %p62 = scmp.ne.s32.totalorder %s54, %s56
      %p63 = scmp.eq.s32.totalorder %s25, 1
      %p64 = por %p62, %p63
      %p65 = scmp.ne.s32.totalorder %s56, %s57
      %p66 = scmp.eq.s32.totalorder %s25, 0
      %p67 = por %p65, %p66
      %p68 = scmp.ne.s32.totalorder %s56, %s57
      %p69 = scmp.eq.s32.totalorder %s26, 1
      %p70 = por %p68, %p69
      %p72 = scmp.ne.s32.totalorder %s57, %s71
      %p73 = scmp.eq.s32.totalorder %s26, 0
      %p74 = por %p72, %p73
      %s76 = sadd.s32 %s75, 1
      %p79 = scmp.eq.s32.totalorder %s20, 1
      %p80 = scmp.ne.s32.totalorder %s75, %s77
      %p81 = scmp.eq.s32.totalorder %s20, 0
      %p82 = por %p80, %p81
      %p83 = scmp.ne.s32.totalorder %s75, %s77
      %p84 = scmp.eq.s32.totalorder %s25, 1
      %p85 = por %p83, %p84
      %p86 = scmp.ne.s32.totalorder %s77, %s78
      %p87 = scmp.eq.s32.totalorder %s25, 0
      %p88 = por %p86, %p87
      %p89 = scmp.ne.s32.totalorder %s77, %s78
      %p90 = scmp.eq.s32.totalorder %s26, 1
      %p91 = por %p89, %p90
      %p93 = scmp.ne.s32.totalorder %s78, %s92
      %p94 = scmp.eq.s32.totalorder %s26, 0
      %p95 = por %p93, %p94
      %s97 = sadd.s32 %s96, 1
      %p100 = scmp.eq.s32.totalorder %s20, 1
      %p101 = scmp.ne.s32.totalorder %s96, %s98
      %p102 = scmp.eq.s32.totalorder %s20, 0
      %p103 = por %p101, %p102
      %p104 = scmp.ne.s32.totalorder %s96, %s98
      %p105 = scmp.eq.s32.totalorder %s25, 1
      %p106 = por %p104, %p105
      %p107 = scmp.ne.s32.totalorder %s98, %s99
      %p108 = scmp.eq.s32.totalorder %s25, 0
      %p109 = por %p107, %p108
      %p110 = scmp.ne.s32.totalorder %s98, %s99
      %p111 = scmp.eq.s32.totalorder %s26, 1
      %p112 = por %p110, %p111
      %p114 = scmp.ne.s32.totalorder %s99, %s113
      %p115 = scmp.eq.s32.totalorder %s26, 0
      %p116 = por %p114, %p115
      %s118 = sadd.s32 %s117, 1
      %p121 = scmp.eq.s32.totalorder %s20, 1
      %p122 = scmp.ne.s32.totalorder %s117, %s119
      %p123 = scmp.eq.s32.totalorder %s20, 0
      %p124 = por %p122, %p123
      %p125 = scmp.ne.s32.totalorder %s117, %s119
      %p126 = scmp.eq.s32.totalorder %s25, 1
      %p127 = por %p125, %p126
      %p128 = scmp.ne.s32.totalorder %s119, %s120
      %p129 = scmp.eq.s32.totalorder %s25, 0
      %p130 = por %p128, %p129
      %p131 = scmp.ne.s32.totalorder %s119, %s120
      %p132 = scmp.eq.s32.totalorder %s26, 1
      %p133 = por %p131, %p132
      %p135 = scmp.ne.s32.totalorder %s120, %s134
      %p136 = scmp.eq.s32.totalorder %s26, 0
      %p137 = por %p135, %p136
      %s139 = sadd.s32 %s138, 1
      %p142 = scmp.eq.s32.totalorder %s20, 1
      %p143 = scmp.ne.s32.totalorder %s138, %s140
      %p144 = scmp.eq.s32.totalorder %s20, 0
      %p145 = por %p143, %p144
      %p146 = scmp.ne.s32.totalorder %s138, %s140
      %p147 = scmp.eq.s32.totalorder %s25, 1
      %p148 = por %p146, %p147
      %p149 = scmp.ne.s32.totalorder %s140, %s141
      %p150 = scmp.eq.s32.totalorder %s25, 0
      %p151 = por %p149, %p150
      %p152 = scmp.ne.s32.totalorder %s140, %s141
      %p153 = scmp.eq.s32.totalorder %s26, 1
      %p154 = por %p152, %p153
      %p156 = scmp.ne.s32.totalorder %s141, %s155
      %p157 = scmp.eq.s32.totalorder %s26, 0
      %p158 = por %p156, %p157
      %s160 = sadd.s32 %s159, 1
      %p163 = scmp.eq.s32.totalorder %s20, 1
      %p164 = scmp.ne.s32.totalorder %s159, %s161
      %p165 = scmp.eq.s32.totalorder %s20, 0
      %p166 = por %p164, %p165
      %p167 = scmp.ne.s32.totalorder %s159, %s161
      %p168 = scmp.eq.s32.totalorder %s25, 1
      %p169 = por %p167, %p168
      %p170 = scmp.ne.s32.totalorder %s161, %s162
      %p171 = scmp.eq.s32.totalorder %s25, 0
      %p172 = por %p170, %p171
      %p173 = scmp.ne.s32.totalorder %s161, %s162
      %p174 = scmp.eq.s32.totalorder %s26, 1
      %p175 = por %p173, %p174
      %p177 = scmp.ne.s32.totalorder %s162, %s176
      %p178 = scmp.eq.s32.totalorder %s26, 0
      %p179 = por %p177, %p178
      %s180 = ssub.s32 %s20, %s27
      %p181 = scmp.eq.s32.totalorder %s180, 0
      %s183 = sadd.s32 %s182, 1
      %s184 = scalar_select %p181, %s182, %s183
      %p187 = pneg %p181
      %p188 = scmp.eq.s32.totalorder %s20, 1
      %p189 = por %p187, %p188
      %p190 = scmp.ne.s32.totalorder %s182, %s185
      %p191 = scmp.eq.s32.totalorder %s20, 0
      %p192 = por %p190, %p191
      %p193 = scmp.ne.s32.totalorder %s182, %s185
      %p194 = scmp.eq.s32.totalorder %s25, 1
      %p195 = por %p193, %p194
      %p196 = scmp.ne.s32.totalorder %s185, %s186
      %p197 = scmp.eq.s32.totalorder %s25, 0
      %p198 = por %p196, %p197
      %p199 = scmp.ne.s32.totalorder %s185, %s186
      %p200 = scmp.eq.s32.totalorder %s26, 1
      %p201 = por %p199, %p200
      %p203 = scmp.ne.s32.totalorder %s186, %s202
      %p204 = scmp.eq.s32.totalorder %s26, 0
      %p205 = por %p203, %p204
      %p206 = scmp.le.s32.totalorder 1, %s20
      %p207 = scmp.lt.s32.totalorder %s20, 3
      %p208 = pnand %p206, %p207
      %p209 = pneg %p208
      // Predicated region
      $region9: #{tpu_custom_call.1} parent=5 // pred_check
        _
      $region10: #{tpu_custom_call.1} parent=5 // pred_check_branch
        %211 = sbr.rel (%p208) target = $region12
      $region11: #{tpu_custom_call.1} parent=5 // pred_region
        %s212 = ssub.s32 %s20, 1
        // Predicated region
        $region13: #{tpu_custom_call.1} parent=11 // pred_check
          %p213 = pneg %p67
        $region14: #{tpu_custom_call.1} parent=11 // pred_check_branch
          %215 = sbr.rel (%p213) target = $region16
        $region15: #{tpu_custom_call.1} parent=11 // pred_region
          %s217 = ssub.s32 2048, 2048
          %218 = vsyncadd [#allocation6], %s217
          %s219 = sshll.u32 [#allocation5], 4
          %s220 = int_to_ptr.vmem [resolvable:$true] %s219
          %225 = dma.hbm_to_vmem [thread:$0]  %s1, 2048, %s220, [#allocation6], 128, 128, 8
        $region16: #{tpu_custom_call.1} parent=11 // pred_fallthru
          _
        // Predicated region
        $region17: #{tpu_custom_call.1} parent=11 // pred_check
          %p226 = pneg %p88
        $region18: #{tpu_custom_call.1} parent=11 // pred_check_branch
          %228 = sbr.rel (%p226) target = $region20
        $region19: #{tpu_custom_call.1} parent=11 // pred_region
          _
        $region20: #{tpu_custom_call.1} parent=11 // pred_fallthru
          _
        // Predicated region
        $region21: #{tpu_custom_call.1} parent=11 // pred_check
          %p229 = pneg %p109
        $region22: #{tpu_custom_call.1} parent=11 // pred_check_branch
          %231 = sbr.rel (%p229) target = $region24
        $region23: #{tpu_custom_call.1} parent=11 // pred_region
          _
        $region24: #{tpu_custom_call.1} parent=11 // pred_fallthru
          _
        // Predicated region
        $region25: #{tpu_custom_call.1} parent=11 // pred_check
          %p232 = pneg %p130
        $region26: #{tpu_custom_call.1} parent=11 // pred_check_branch
          %234 = sbr.rel (%p232) target = $region28
        $region27: #{tpu_custom_call.1} parent=11 // pred_region
          _
        $region28: #{tpu_custom_call.1} parent=11 // pred_fallthru
          _
        // Predicated region
        $region29: #{tpu_custom_call.1} parent=11 // pred_check
          %p235 = pneg %p151
        $region30: #{tpu_custom_call.1} parent=11 // pred_check_branch
          %237 = sbr.rel (%p235) target = $region32
        $region31: #{tpu_custom_call.1} parent=11 // pred_region
          %s239 = ssub.s32 2048, 2048
          %240 = vsyncadd [#allocation6], %s239
          %s241 = sshll.u32 [#allocation7], 4
          %s242 = int_to_ptr.vmem [resolvable:$true] %s241
          %247 = dma.hbm_to_vmem [thread:$0]  %s5, 2048, %s242, [#allocation6], 64, 64, 4
        $region32: #{tpu_custom_call.1} parent=11 // pred_fallthru
          _
        // Predicated region
        $region33: #{tpu_custom_call.1} parent=11 // pred_check
          %p248 = pneg %p172
        $region34: #{tpu_custom_call.1} parent=11 // pred_check_branch
          %250 = sbr.rel (%p248) target = $region36
        $region35: #{tpu_custom_call.1} parent=11 // pred_region
          _
        $region36: #{tpu_custom_call.1} parent=11 // pred_fallthru
          _
      $region12: #{tpu_custom_call.1} parent=5 // pred_fallthru
        _
      %p251 = scmp.lt.s32.totalorder %s20, 2
      // Predicated region
      $region37: #{tpu_custom_call.1} parent=5 // pred_check
        %p252 = pneg %p251
      $region38: #{tpu_custom_call.1} parent=5 // pred_check_branch
        %254 = sbr.rel (%p252) target = $region40
      $region39: #{tpu_custom_call.1} parent=5 // pred_region
        // Predicated region
        $region41: #{tpu_custom_call.1} parent=39 // pred_check
          %p255 = pneg %p40
        $region42: #{tpu_custom_call.1} parent=39 // pred_check_branch
          %257 = sbr.rel (%p255) target = $region44
        $region43: #{tpu_custom_call.1} parent=39 // pred_region
          %s258 = sand.u32 %s30, 1
          %s259 = scalar_lea.sflag [#allocation3], %s258
          %s260 = sand.u32 %s30, 1
          %s261 = smul.addr %s260, 8
          %s262 = scalar_lea.vmem [#allocation2], %s261
          %s264 = ssub.s32 128, 128
          %265 = vsyncadd %s259, %s264
          %s266 = smul.addr %s20, 128
          %s267 = scalar_lea.hbm %s0, %s266
          %s269 = sshll.u32 %s262, 4
          %s270 = int_to_ptr.vmem [resolvable:$true] %s269
          %272 = dma.hbm_to_vmem [thread:$0]  %s267, 128, %s270, %s259
        $region44: #{tpu_custom_call.1} parent=39 // pred_fallthru
          _
      $region40: #{tpu_custom_call.1} parent=5 // pred_fallthru
        _
      %p273 = scmp.le.s32.totalorder 1, %s20
      %p274 = scmp.lt.s32.totalorder %s20, 3
      %p275 = pnand %p273, %p274
      %p276 = pneg %p275
      // Predicated region
      $region45: #{tpu_custom_call.1} parent=5 // pred_check
        _
      $region46: #{tpu_custom_call.1} parent=5 // pred_check_branch
        %278 = sbr.rel (%p275) target = $region48
      $region47: #{tpu_custom_call.1} parent=5 // pred_region
        %s279 = ssub.s32 %s20, 1
        %s280 = sand.u32 %s33, 1
        %s281 = scalar_lea.sflag [#allocation3], %s280
        %s282 = sand.u32 %s33, 1
        %s283 = smul.addr %s282, 8
        %s284 = scalar_lea.vmem [#allocation2], %s283
        // Predicated region
        $region49: #{tpu_custom_call.1} parent=47 // pred_check
          %p285 = pneg %p46
        $region50: #{tpu_custom_call.1} parent=47 // pred_check_branch
          %287 = sbr.rel (%p285) target = $region52
        $region51: #{tpu_custom_call.1} parent=47 // pred_region
          %288 = dma.done %s281, 128
        $region52: #{tpu_custom_call.1} parent=47 // pred_fallthru
          _
        // Predicated region
        $region53: #{tpu_custom_call.1} parent=47 // pred_check
          %p289 = pneg %p67
        $region54: #{tpu_custom_call.1} parent=47 // pred_check_branch
          %291 = sbr.rel (%p289) target = $region56
        $region55: #{tpu_custom_call.1} parent=47 // pred_region
          %292 = dma.done [#allocation6], 2048
        $region56: #{tpu_custom_call.1} parent=47 // pred_fallthru
          _
        // Predicated region
        $region57: #{tpu_custom_call.1} parent=47 // pred_check
          %p293 = pneg %p151
        $region58: #{tpu_custom_call.1} parent=47 // pred_check_branch
          %295 = sbr.rel (%p293) target = $region60
        $region59: #{tpu_custom_call.1} parent=47 // pred_region
          %296 = dma.done [#allocation6], 2048
        $region60: #{tpu_custom_call.1} parent=47 // pred_fallthru
          _
        %s297 = sand.u32 %s33, 1
        %s298 = scalar_lea.sflag [#allocation3], %s297
        %s299 = sand.u32 %s33, 1
        %s300 = smul.addr %s299, 8
        %s301 = scalar_lea.vmem [#allocation2], %s300
        %p302 = pneg %p46
        %p303 = pneg %p43
        %p304 = pneg %p67
        %p305 = pneg %p64
        %p306 = pneg %p88
        %p307 = pneg %p85
        %p308 = pneg %p109
        %p309 = pneg %p106
        %p310 = pneg %p130
        %p311 = pneg %p127
        %p312 = pneg %p151
        %p313 = pneg %p148
        %p314 = pneg %p172
        %p315 = pneg %p169
        %p316 = pneg %p198
        %p317 = pneg %p195
        %s318 = sand.u32 %s185, 1
        %s319 = scalar_lea.sflag [#allocation4], %s318
        %s320 = sand.u32 %s185, 1
        %s321 = smul.addr %s320, 8
        %s322 = scalar_lea.vmem [#allocation8], %s321
        %v328 = vld [vmem:[%s284] sm:$0xff]
        %v329 = vpack.c.bf16 %v328, %v328
        %v330 = vld [vmem:[#allocation5] sm:$0xff]
        %v331 = vld [vmem:[#allocation5 + $0x8] sm:$0xff]
        %v332 = vld [vmem:[#allocation5 + $0x10] sm:$0xff]
        %v333 = vld [vmem:[#allocation5 + $0x18] sm:$0xff]
        %v334 = vld [vmem:[#allocation5 + $0x20] sm:$0xff]
        %v335 = vld [vmem:[#allocation5 + $0x28] sm:$0xff]
        %v336 = vld [vmem:[#allocation5 + $0x30] sm:$0xff]
        %v337 = vld [vmem:[#allocation5 + $0x38] sm:$0xff]
        %v338 = vld [vmem:[#allocation5 + $0x40] sm:$0xff]
        %v339 = vld [vmem:[#allocation5 + $0x48] sm:$0xff]
        %v340 = vld [vmem:[#allocation5 + $0x50] sm:$0xff]
        %v341 = vld [vmem:[#allocation5 + $0x58] sm:$0xff]
        %v342 = vld [vmem:[#allocation5 + $0x60] sm:$0xff]
        %v343 = vld [vmem:[#allocation5 + $0x68] sm:$0xff]
        %v344 = vld [vmem:[#allocation5 + $0x70] sm:$0xff]
        %v345 = vld [vmem:[#allocation5 + $0x78] sm:$0xff]
        %v346 = vld [vmem:[%s2] sm:$0x3]
        %v348 = vlaneseq
        %v349 = vshrl.u32 %v348, 7
        %v350 = vsub.s32 0, %v349
        %v351 = vrot.slane %v346, %v350
        %v352 = vlaneseq
        %v353 = vshrl.u32 %v352, 7
        %v354 = vsub.s32 1, %v353
        %v355 = vrot.slane %v346, %v354
        %v374 = vunpack.c.l.b16 %v330
        %v375 = vunpack.c.h.b16 %v330
        %v376 = vunpack.c.l.b16 %v331
        %v377 = vunpack.c.h.b16 %v331
        %v378 = vunpack.c.l.b16 %v332
        %v379 = vunpack.c.h.b16 %v332
        %v380 = vunpack.c.l.b16 %v333
        %v381 = vunpack.c.h.b16 %v333
        %v382 = vunpack.c.l.b16 %v334
        %v383 = vunpack.c.h.b16 %v334
        %v384 = vunpack.c.l.b16 %v335
        %v385 = vunpack.c.h.b16 %v335
        %v386 = vunpack.c.l.b16 %v336
        %v387 = vunpack.c.h.b16 %v336
        %v388 = vunpack.c.l.b16 %v337
        %v389 = vunpack.c.h.b16 %v337
        %v390 = vunpack.c.l.b16 %v338
        %v391 = vunpack.c.h.b16 %v338
        %v392 = vunpack.c.l.b16 %v339
        %v393 = vunpack.c.h.b16 %v339
        %v394 = vunpack.c.l.b16 %v340
        %v395 = vunpack.c.h.b16 %v340
        %v396 = vunpack.c.l.b16 %v341
        %v397 = vunpack.c.h.b16 %v341
        %v398 = vunpack.c.l.b16 %v342
        %v399 = vunpack.c.h.b16 %v342
        %v400 = vunpack.c.l.b16 %v343
        %v401 = vunpack.c.h.b16 %v343
        %v402 = vunpack.c.l.b16 %v344
        %v403 = vunpack.c.h.b16 %v344
        %v404 = vunpack.c.l.b16 %v345
        %v405 = vunpack.c.h.b16 %v345
        %v406 = vpack.c.b16 %v376, %v374
        %v407 = vpack.c.b16 %v377, %v375
        %v408 = vpack.c.b16 %v380, %v378
        %v409 = vpack.c.b16 %v381, %v379
        %v410 = vpack.c.b16 %v384, %v382
        %v411 = vpack.c.b16 %v385, %v383
        %v412 = vpack.c.b16 %v388, %v386
        %v413 = vpack.c.b16 %v389, %v387
        %v414 = vpack.c.b16 %v392, %v390
        %v415 = vpack.c.b16 %v393, %v391
        %v416 = vpack.c.b16 %v396, %v394
        %v417 = vpack.c.b16 %v397, %v395
        %v418 = vpack.c.b16 %v400, %v398
        %v419 = vpack.c.b16 %v401, %v399
        %v420 = vpack.c.b16 %v404, %v402
        %v421 = vpack.c.b16 %v405, %v403
        %438 = vmatprep.subr.bf16.mxu0 %v421
        %439 = vmatpush1.bf16.msra.mxu0 %v420
        %440 = vmatprep.subr.bf16.mxu0 %v419
        %441 = vmatpush1.bf16.msra.mxu0 %v418
        %442 = vmatprep.subr.bf16.mxu0 %v417
        %443 = vmatpush1.bf16.msra.mxu0 %v416
        %444 = vmatprep.subr.bf16.mxu0 %v415
        %445 = vmatpush1.bf16.msra.mxu0 %v414
        %446 = vmatprep.subr.bf16.mxu0 %v413
        %447 = vmatpush1.bf16.msra.mxu0 %v412
        %448 = vmatprep.subr.bf16.mxu0 %v411
        %449 = vmatpush1.bf16.msra.mxu0 %v410
        %450 = vmatprep.subr.bf16.mxu0 %v409
        %451 = vmatpush1.bf16.msra.mxu0 %v408
        %452 = vmatprep.subr.bf16.mxu0 %v407
        %453 = vmatpush1.bf16.msra.mxu0 %v406
        %454 = vmatprep.subr.bf16.mxu0 0
        %455 = vmatpush2.bf16.msra.mxu0 0
        %456 = vmatprep.subr.bf16.mxu0 0
        %457 = vmatpush2.bf16.msra.mxu0 0
        %458 = vmatprep.subr.bf16.mxu0 0
        %459 = vmatpush2.bf16.msra.mxu0 0
        %460 = vmatprep.subr.bf16.mxu0 0
        %461 = vmatpush2.bf16.msra.mxu0 0
        %462 = vmatprep.subr.bf16.mxu0 0
        %463 = vmatpush2.bf16.msra.mxu0 0
        %464 = vmatprep.subr.bf16.mxu0 0
        %465 = vmatpush2.bf16.msra.mxu0 0
        %466 = vmatprep.subr.bf16.mxu0 0
        %467 = vmatpush2.bf16.msra.mxu0 0
        %468 = vmatprep.subr.bf16.mxu0 0
        %469 = vmatpush2.bf16.msra.mxu0 0
        %470 = vmatprep.mubr.bf16.mxu0 0
        %471 = vmatmul.mubr.bf16.gmra.mxu0 %v329
        %v472 = vpop.f32.mrf.mxu0
        %v473 = vadd.f32 %v351, %v472
        %v474 = vpop.f32.mrf.mxu0
        %v475 = vadd.f32 %v355, %v474
        %v476 = vpop.f32.mrf.mxu0
        %v477 = vpop.f32.mrf.mxu0
        %478 = vdwg.mxu0
        %v479 = vadd.f32 %v473, %v475
        %480 = vadd.xlane.f32.xlu0 %v479
        %v481 = vpop.xlane.xlu0 %480
        %v482 = vmul.f32 %v481, 0.00390625
        %v483 = vmul.f32 %v473, %v473
        %v484 = vmul.f32 %v475, %v475
        %v485 = vadd.f32 %v483, %v484
        %486 = vadd.xlane.f32.xlu0 %v485
        %v487 = vpop.xlane.xlu0 %486
        %v488 = vmul.f32 %v487, 0.00390625
        %v489 = vmul.f32 %v482, %v482
        %v490 = vsub.f32 %v488, %v489
        %v491 = vmax.f32 %v490, 0.0
        %v492 = vadd.f32 %v491, 1e-05
        %v493 = vrsqrt.pop %v492
        %v494 = vsub.f32 %v473, %v482
        %v495 = vsub.f32 %v475, %v482
        %v496 = vmul.f32 %v494, %v493
        %v497 = vmul.f32 %v495, %v493
        %v498 = vpack.c.bf16 %v496, %v496
        %v499 = vpack.c.bf16 %v497, %v497
        %v500 = vld [vmem:[%s3] sm:$0x3]
        %v502 = vlaneseq
        %v503 = vshrl.u32 %v502, 7
        %v504 = vsub.s32 0, %v503
        %v505 = vrot.slane %v500, %v504
        %v506 = vlaneseq
        %v507 = vshrl.u32 %v506, 7
        %v508 = vsub.s32 1, %v507
        %v509 = vrot.slane %v500, %v508
        %v512 = vpack.c.bf16 %v505, %v505
        %v513 = vpack.c.bf16 %v509, %v509
        %v515 = vpack.i.b16 %v512, %v512
        %v517 = vlaneseq
        %v518 = vshrl.u32 %v517, 7
        %v519 = vsub.s32 0, %v518
        %v520 = vrot.slane %v515, %v519
        %v522 = vpack.i.b16 %v513, %v513
        %v524 = vlaneseq
        %v525 = vshrl.u32 %v524, 7
        %v526 = vsub.s32 0, %v525
        %v527 = vrot.slane %v522, %v526
        %v528 = vmul.bf16 %v498, %v520
        %v529 = vmul.bf16 %v499, %v527
        %v530 = vld [vmem:[%s4] sm:$0x3]
        %v532 = vlaneseq
        %v533 = vshrl.u32 %v532, 7
        %v534 = vsub.s32 0, %v533
        %v535 = vrot.slane %v530, %v534
        %v536 = vlaneseq
        %v537 = vshrl.u32 %v536, 7
        %v538 = vsub.s32 1, %v537
        %v539 = vrot.slane %v530, %v538
        %v542 = vpack.c.bf16 %v535, %v535
        %v543 = vpack.c.bf16 %v539, %v539
        %v545 = vpack.i.b16 %v542, %v542
        %v547 = vlaneseq
        %v548 = vshrl.u32 %v547, 7
        %v549 = vsub.s32 0, %v548
        %v550 = vrot.slane %v545, %v549
        %v552 = vpack.i.b16 %v543, %v543
        %v554 = vlaneseq
        %v555 = vshrl.u32 %v554, 7
        %v556 = vsub.s32 0, %v555
        %v557 = vrot.slane %v552, %v556
        %v558 = vadd.bf16 %v528, %v550
        %v559 = vadd.bf16 %v529, %v557
        %v560 = vmul.bf16 %v558, 1056980736
        %v561 = vmul.bf16 %v559, 1056980736
        %v562 = vmul.bf16 %v558, 1061961548
        %v563 = vmul.bf16 %v559, 1061961548
        %v564 = vmul.bf16 %v558, 1027030327
        %v565 = vmul.bf16 %v559, 1027030327
        %v566 = vmul.bf16 %v564, %v558
        %v567 = vmul.bf16 %v565, %v559
        %v568 = vadd.bf16 %v566, 1065369472
        %v569 = vadd.bf16 %v567, 1065369472
        %v570 = vmul.bf16 %v562, %v568
        %v571 = vmul.bf16 %v563, %v569
        %v572 = vtanh.bf16.pop %v570
        %v573 = vtanh.bf16.pop %v571
        %v574 = vadd.bf16 %v572, 1065369472
        %v575 = vadd.bf16 %v573, 1065369472
        %v576 = vmul.bf16 %v560, %v574
        %v577 = vmul.bf16 %v561, %v575
        %v578 = vld [vmem:[#allocation7] sm:$0xf]
        %v579 = vld [vmem:[#allocation7 + $0x4] sm:$0xf]
        %v580 = vld [vmem:[#allocation7 + $0x8] sm:$0xf]
        %v581 = vld [vmem:[#allocation7 + $0xc] sm:$0xf]
        %v582 = vld [vmem:[#allocation7 + $0x10] sm:$0xf]
        %v583 = vld [vmem:[#allocation7 + $0x14] sm:$0xf]
        %v584 = vld [vmem:[#allocation7 + $0x18] sm:$0xf]
        %v585 = vld [vmem:[#allocation7 + $0x1c] sm:$0xf]
        %v586 = vld [vmem:[#allocation7 + $0x20] sm:$0xf]
        %v587 = vld [vmem:[#allocation7 + $0x24] sm:$0xf]
        %v588 = vld [vmem:[#allocation7 + $0x28] sm:$0xf]
        %v589 = vld [vmem:[#allocation7 + $0x2c] sm:$0xf]
        %v590 = vld [vmem:[#allocation7 + $0x30] sm:$0xf]
        %v591 = vld [vmem:[#allocation7 + $0x34] sm:$0xf]
        %v592 = vld [vmem:[#allocation7 + $0x38] sm:$0xf]
        %v593 = vld [vmem:[#allocation7 + $0x3c] sm:$0xf]
        %v594 = vld [vmem:[#allocation7 + $0x40] sm:$0xf]
        %v595 = vld [vmem:[#allocation7 + $0x44] sm:$0xf]
        %v596 = vld [vmem:[#allocation7 + $0x48] sm:$0xf]
        %v597 = vld [vmem:[#allocation7 + $0x4c] sm:$0xf]
        %v598 = vld [vmem:[#allocation7 + $0x50] sm:$0xf]
        %v599 = vld [vmem:[#allocation7 + $0x54] sm:$0xf]
        %v600 = vld [vmem:[#allocation7 + $0x58] sm:$0xf]
        %v601 = vld [vmem:[#allocation7 + $0x5c] sm:$0xf]
        %v602 = vld [vmem:[#allocation7 + $0x60] sm:$0xf]
        %v603 = vld [vmem:[#allocation7 + $0x64] sm:$0xf]
        %v604 = vld [vmem:[#allocation7 + $0x68] sm:$0xf]
        %v605 = vld [vmem:[#allocation7 + $0x6c] sm:$0xf]
        %v606 = vld [vmem:[#allocation7 + $0x70] sm:$0xf]
        %v607 = vld [vmem:[#allocation7 + $0x74] sm:$0xf]
        %v608 = vld [vmem:[#allocation7 + $0x78] sm:$0xf]
        %v609 = vld [vmem:[#allocation7 + $0x7c] sm:$0xf]
        %v610 = vld [vmem:[%s6] sm:$0x1]
        %v612 = vlaneseq
        %v613 = vshrl.u32 %v612, 7
        %v614 = vsub.s32 0, %v613
        %v615 = vrot.slane %v610, %v614
        %v649 = vunpack.c.l.b16 %v578
        %v650 = vunpack.c.l.b16 %v579
        %v651 = vunpack.c.l.b16 %v580
        %v652 = vunpack.c.l.b16 %v581
        %v653 = vunpack.c.l.b16 %v582
        %v654 = vunpack.c.l.b16 %v583
        %v655 = vunpack.c.l.b16 %v584
        %v656 = vunpack.c.l.b16 %v585
        %v657 = vunpack.c.l.b16 %v586
        %v658 = vunpack.c.l.b16 %v587
        %v659 = vunpack.c.l.b16 %v588
        %v660 = vunpack.c.l.b16 %v589
        %v661 = vunpack.c.l.b16 %v590
        %v662 = vunpack.c.l.b16 %v591
        %v663 = vunpack.c.l.b16 %v592
        %v664 = vunpack.c.l.b16 %v593
        %v665 = vunpack.c.l.b16 %v594
        %v666 = vunpack.c.l.b16 %v595
        %v667 = vunpack.c.l.b16 %v596
        %v668 = vunpack.c.l.b16 %v597
        %v669 = vunpack.c.l.b16 %v598
        %v670 = vunpack.c.l.b16 %v599
        %v671 = vunpack.c.l.b16 %v600
        %v672 = vunpack.c.l.b16 %v601
        %v673 = vunpack.c.l.b16 %v602
        %v674 = vunpack.c.l.b16 %v603
        %v675 = vunpack.c.l.b16 %v604
        %v676 = vunpack.c.l.b16 %v605
        %v677 = vunpack.c.l.b16 %v606
        %v678 = vunpack.c.l.b16 %v607
        %v679 = vunpack.c.l.b16 %v608
        %v680 = vunpack.c.l.b16 %v609
        %v681 = vpack.c.b16 %v650, %v649
        %v682 = vpack.c.b16 %v652, %v651
        %v683 = vpack.c.b16 %v654, %v653
        %v684 = vpack.c.b16 %v656, %v655
        %v685 = vpack.c.b16 %v658, %v657
        %v686 = vpack.c.b16 %v660, %v659
        %v687 = vpack.c.b16 %v662, %v661
        %v688 = vpack.c.b16 %v664, %v663
        %v689 = vpack.c.b16 %v666, %v665
        %v690 = vpack.c.b16 %v668, %v667
        %v691 = vpack.c.b16 %v670, %v669
        %v692 = vpack.c.b16 %v672, %v671
        %v693 = vpack.c.b16 %v674, %v673
        %v694 = vpack.c.b16 %v676, %v675
        %v695 = vpack.c.b16 %v678, %v677
        %v696 = vpack.c.b16 %v680, %v679
        %713 = vmatprep.subr.bf16.mxu0 0
        %714 = vmatpush1.bf16.msra.mxu0 %v688
        %715 = vmatprep.subr.bf16.mxu0 0
        %716 = vmatpush1.bf16.msra.mxu0 %v687
        %717 = vmatprep.subr.bf16.mxu0 0
        %718 = vmatpush1.bf16.msra.mxu0 %v686
        %719 = vmatprep.subr.bf16.mxu0 0
        %720 = vmatpush1.bf16.msra.mxu0 %v685
        %721 = vmatprep.subr.bf16.mxu0 0
        %722 = vmatpush1.bf16.msra.mxu0 %v684
        %723 = vmatprep.subr.bf16.mxu0 0
        %724 = vmatpush1.bf16.msra.mxu0 %v683
        %725 = vmatprep.subr.bf16.mxu0 0
        %726 = vmatpush1.bf16.msra.mxu0 %v682
        %727 = vmatprep.subr.bf16.mxu0 0
        %728 = vmatpush1.bf16.msra.mxu0 %v681
        %729 = vmatprep.subr.bf16.mxu0 0
        %730 = vmatpush2.bf16.msra.mxu0 %v696
        %731 = vmatprep.subr.bf16.mxu0 0
        %732 = vmatpush2.bf16.msra.mxu0 %v695
        %733 = vmatprep.subr.bf16.mxu0 0
        %734 = vmatpush2.bf16.msra.mxu0 %v694
        %735 = vmatprep.subr.bf16.mxu0 0
        %736 = vmatpush2.bf16.msra.mxu0 %v693
        %737 = vmatprep.subr.bf16.mxu0 0
        %738 = vmatpush2.bf16.msra.mxu0 %v692
        %739 = vmatprep.subr.bf16.mxu0 0
        %740 = vmatpush2.bf16.msra.mxu0 %v691
        %741 = vmatprep.subr.bf16.mxu0 0
        %742 = vmatpush2.bf16.msra.mxu0 %v690
        %743 = vmatprep.subr.bf16.mxu0 0
        %744 = vmatpush2.bf16.msra.mxu0 %v689
        %745 = vmatprep.mubr.bf16.mxu0 %v577
        %746 = vmatmul.mubr.bf16.gmra.mxu0 %v576
        %v747 = vpop.f32.mrf.mxu0
        %v748 = vadd.f32 %v615, %v747
        %v749 = vpop.f32.mrf.mxu0
        %v750 = vpop.f32.mrf.mxu0
        %v751 = vpop.f32.mrf.mxu0
        %752 = vdwg.mxu0
        %753 = vst [vmem:[%s322] sm:$0xff] %v748
        %s754 = sand.u32 %s185, 1
        %s755 = scalar_lea.sflag [#allocation4], %s754
        %s756 = sand.u32 %s185, 1
        %s757 = smul.addr %s756, 8
        %s758 = scalar_lea.vmem [#allocation8], %s757
        // Predicated region
        $region61: #{tpu_custom_call.1} parent=47 // pred_check
          %p759 = pneg %p195
        $region62: #{tpu_custom_call.1} parent=47 // pred_check_branch
          %761 = sbr.rel (%p759) target = $region64
        $region63: #{tpu_custom_call.1} parent=47 // pred_region
          %s763 = ssub.s32 128, 128
          %764 = vsyncadd %s755, %s763
          %s765 = smul.addr %s25, 128
          %s766 = scalar_lea.hbm %s7, %s765
          %s768 = sshll.u32 %s758, 4
          %s769 = int_to_ptr.vmem [resolvable:$true] %s768
          %771 = dma.vmem_to_hbm [thread:$0]  %s769, 128, %s766, %s755
        $region64: #{tpu_custom_call.1} parent=47 // pred_fallthru
          _
      $region48: #{tpu_custom_call.1} parent=5 // pred_fallthru
        _
      %p772 = scmp.le.s32.totalorder 2, %s20
      // Predicated region
      $region65: #{tpu_custom_call.1} parent=5 // pred_check
        %p773 = pneg %p772
      $region66: #{tpu_custom_call.1} parent=5 // pred_check_branch
        %775 = sbr.rel (%p773) target = $region68
      $region67: #{tpu_custom_call.1} parent=5 // pred_region
        %s776 = ssub.s32 %s20, 2
        // Predicated region
        $region69: #{tpu_custom_call.1} parent=67 // pred_check
          %p777 = pneg %p201
        $region70: #{tpu_custom_call.1} parent=67 // pred_check_branch
          %779 = sbr.rel (%p777) target = $region72
        $region71: #{tpu_custom_call.1} parent=67 // pred_region
          %s780 = sand.u32 %s186, 1
          %s781 = scalar_lea.sflag [#allocation4], %s780
          %s782 = sand.u32 %s186, 1
          %s783 = smul.addr %s782, 8
          %s784 = scalar_lea.vmem [#allocation8], %s783
          %785 = dma.done %s781, 128
        $region72: #{tpu_custom_call.1} parent=67 // pred_fallthru
          _
      $region68: #{tpu_custom_call.1} parent=5 // pred_fallthru
        _
    $region6: #{tpu_custom_call.1} parent=1 // loop_footer
      %s24 = sadd.s32 1, %s20
    $region7: #{tpu_custom_call.1} parent=1 // loop_footer_branch
      %19 = sbr.rel target = $region3
    $region8: #{tpu_custom_call.1} parent=1 // loop_exit
      _
    %786 = vsyncpa [#allocation3], 1
    %s787 = scalar_lea.sflag [#allocation3], 1
    %788 = vsyncpa %s787, 1
    %789 = vsyncpa [#allocation6], 1
    %790 = vsyncpa [#allocation4], 1
    %s791 = scalar_lea.sflag [#allocation4], 1
    %792 = vsyncpa %s791, 1

// kernel: tpu_custom_call.1
$region0: #{tpu_custom_call.1}
  #allocation0 [shape = 'u32[]', space=smem, size = 0x4, offset = 0x4, fixed_abs, tag = 'smem constant byte address 0x4 - core index']
  #allocation1 [shape = 'u32[144,128]{1,0:T(1,128)}', space=vmem, size = 0x12000, scoped, tag = 'internal scratch']
  %s0 = inlined_call_operand.hbm [shape: f32[16,128], index: 0, kind: input, shape index: {}]
  %s1 = inlined_call_operand.hbm [shape: bf16[128,256], index: 1, kind: input, shape index: {}]
  %s2 = inlined_call_operand.vmem [shape: f32[1,256], index: 2, kind: input, shape index: {}]
  %s3 = inlined_call_operand.vmem [shape: f32[1,256], index: 3, kind: input, shape index: {}]
  %s4 = inlined_call_operand.vmem [shape: f32[1,256], index: 4, kind: input, shape index: {}]
  %s5 = inlined_call_operand.hbm [shape: bf16[256,128], index: 5, kind: input, shape index: {}]
  %s6 = inlined_call_operand.vmem [shape: f32[1,128], index: 6, kind: input, shape index: {}]
  %s7 = inlined_call_operand.hbm [shape: f32[16,128], index: 7, kind: output, shape index: {}]
  %s8 = sld [smem:[#allocation0]]
  $region73: #{tpu_custom_call.1} parent=0
    _
  %s10 = ssub.s32 1, %s8
  %s11 = scalar_select 0, %s10, %s8
  $region1: #{tpu_custom_call.1} parent=0
    #allocation2 [shape = 'u8[8192]{0}', space=vmem, size = 0x2000, scoped, tag = 'input window, operand 0']
    #allocation3 [shape = 's32[2]{0}', space=sflag, size = 0x8, scoped, tag = 'scoped memory for tpu_custom_call.1']
    #allocation4 [shape = 's32[2]{0}', space=sflag, size = 0x8, scoped, tag = 'scoped memory for tpu_custom_call.1']
    #allocation5 [shape = 'u8[65536]{0}', space=vmem, size = 0x10000, scoped, tag = 'input window, operand 1, single buffered']
    #allocation6 [shape = 's32[1]{0}', space=sflag, size = 0x4, scoped, tag = 'scoped memory for tpu_custom_call.1']
    #allocation7 [shape = 'u8[65536]{0}', space=vmem, size = 0x10000, scoped, tag = 'input window, operand 5, single buffered']
    #allocation8 [shape = 'u8[8192]{0}', space=vmem, size = 0x2000, scoped, tag = 'output window, operand 0']
    %12 = vsyncpa [#allocation3], 0
    %s13 = scalar_lea.sflag [#allocation3], 1
    %14 = vsyncpa %s13, 0
    %15 = vsyncpa [#allocation6], 0
    %16 = vsyncpa [#allocation4], 0
    %s17 = scalar_lea.sflag [#allocation4], 1
    %18 = vsyncpa %s17, 0
    loop: start=0, step=1, limit=4
    $region2: #{tpu_custom_call.1} parent=1 // loop_pre_header
      _
    $region3: #{tpu_custom_call.1} parent=1 // loop_header
      %s20 = sphi 0, %s24
      %p21 = scmp.ge.s32.totalorder %s20, 4
      %s30 = sphi 0, %s32
      %s33 = sphi 0, %s30
      %s34 = sphi 0, %s33
      %s50 = sphi 0, %s34
      %s54 = sphi 0, %s54
      %s56 = sphi 0, %s54
      %s57 = sphi 0, %s56
      %s71 = sphi 0, %s57
      %s75 = sphi 0, %s75
      %s77 = sphi 0, %s75
      %s78 = sphi 0, %s77
      %s92 = sphi 0, %s78
      %s96 = sphi 0, %s96
      %s98 = sphi 0, %s96
      %s99 = sphi 0, %s98
      %s113 = sphi 0, %s99
      %s117 = sphi 0, %s117
      %s119 = sphi 0, %s117
      %s120 = sphi 0, %s119
      %s134 = sphi 0, %s120
      %s138 = sphi 0, %s138
      %s140 = sphi 0, %s138
      %s141 = sphi 0, %s140
      %s155 = sphi 0, %s141
      %s159 = sphi 0, %s159
      %s161 = sphi 0, %s159
      %s162 = sphi 0, %s161
      %s176 = sphi 0, %s162
      %s182 = sphi 0, %s184
      %s185 = sphi 0, %s182
      %s186 = sphi 0, %s185
      %s202 = sphi 0, %s186
    $region4: #{tpu_custom_call.1} parent=1 // loop_header_branch
      %23 = sbr.rel (%p21) target = $region8
    $region5: #{tpu_custom_call.1} parent=1 // loop_body
      %s25 = ssub.s32 %s20, 1
      %s26 = ssub.s32 %s20, 2
      %s27 = sadd.s32 %s20, 1
      %s28 = ssub.s32 %s20, %s27
      %p29 = scmp.eq.s32.totalorder %s28, 0
      %s31 = sadd.s32 %s30, 1
      %s32 = scalar_select %p29, %s30, %s31
      %p35 = pneg %p29
      %p36 = scmp.eq.s32.totalorder %s20, 1
      %p37 = por %p35, %p36
      %p38 = scmp.ne.s32.totalorder %s30, %s33
      %p39 = scmp.eq.s32.totalorder %s20, 0
      %p40 = por %p38, %p39
      %p41 = scmp.ne.s32.totalorder %s30, %s33
      %p42 = scmp.eq.s32.totalorder %s25, 1
      %p43 = por %p41, %p42
      %p44 = scmp.ne.s32.totalorder %s33, %s34
      %p45 = scmp.eq.s32.totalorder %s25, 0
      %p46 = por %p44, %p45
      %p47 = scmp.ne.s32.totalorder %s33, %s34
      %p48 = scmp.eq.s32.totalorder %s26, 1
      %p49 = por %p47, %p48
      %p51 = scmp.ne.s32.totalorder %s34, %s50
      %p52 = scmp.eq.s32.totalorder %s26, 0
      %p53 = por %p51, %p52
      %s55 = sadd.s32 %s54, 1
      %p58 = scmp.eq.s32.totalorder %s20, 1
      %p59 = scmp.ne.s32.totalorder %s54, %s56
      %p60 = scmp.eq.s32.totalorder %s20, 0
      %p61 = por %p59, %p60
      %p62 = scmp.ne.s32.totalorder %s54, %s56
      %p63 = scmp.eq.s32.totalorder %s25, 1
      %p64 = por %p62, %p63
      %p65 = scmp.ne.s32.totalorder %s56, %s57
      %p66 = scmp.eq.s32.totalorder %s25, 0
      %p67 = por %p65, %p66
      %p68 = scmp.ne.s32.totalorder %s56, %s57
      %p69 = scmp.eq.s32.totalorder %s26, 1
      %p70 = por %p68, %p69
      %p72 = scmp.ne.s32.totalorder %s57, %s71
      %p73 = scmp.eq.s32.totalorder %s26, 0
      %p74 = por %p72, %p73
      %s76 = sadd.s32 %s75, 1
      %p79 = scmp.eq.s32.totalorder %s20, 1
      %p80 = scmp.ne.s32.totalorder %s75, %s77
      %p81 = scmp.eq.s32.totalorder %s20, 0
      %p82 = por %p80, %p81
      %p83 = scmp.ne.s32.totalorder %s75, %s77
      %p84 = scmp.eq.s32.totalorder %s25, 1
      %p85 = por %p83, %p84
      %p86 = scmp.ne.s32.totalorder %s77, %s78
      %p87 = scmp.eq.s32.totalorder %s25, 0
      %p88 = por %p86, %p87
      %p89 = scmp.ne.s32.totalorder %s77, %s78
      %p90 = scmp.eq.s32.totalorder %s26, 1
      %p91 = por %p89, %p90
      %p93 = scmp.ne.s32.totalorder %s78, %s92
      %p94 = scmp.eq.s32.totalorder %s26, 0
      %p95 = por %p93, %p94
      %s97 = sadd.s32 %s96, 1
      %p100 = scmp.eq.s32.totalorder %s20, 1
      %p101 = scmp.ne.s32.totalorder %s96, %s98
      %p102 = scmp.eq.s32.totalorder %s20, 0
      %p103 = por %p101, %p102
      %p104 = scmp.ne.s32.totalorder %s96, %s98
      %p105 = scmp.eq.s32.totalorder %s25, 1
      %p106 = por %p104, %p105
      %p107 = scmp.ne.s32.totalorder %s98, %s99
      %p108 = scmp.eq.s32.totalorder %s25, 0
      %p109 = por %p107, %p108
      %p110 = scmp.ne.s32.totalorder %s98, %s99
      %p111 = scmp.eq.s32.totalorder %s26, 1
      %p112 = por %p110, %p111
      %p114 = scmp.ne.s32.totalorder %s99, %s113
      %p115 = scmp.eq.s32.totalorder %s26, 0
      %p116 = por %p114, %p115
      %s118 = sadd.s32 %s117, 1
      %p121 = scmp.eq.s32.totalorder %s20, 1
      %p122 = scmp.ne.s32.totalorder %s117, %s119
      %p123 = scmp.eq.s32.totalorder %s20, 0
      %p124 = por %p122, %p123
      %p125 = scmp.ne.s32.totalorder %s117, %s119
      %p126 = scmp.eq.s32.totalorder %s25, 1
      %p127 = por %p125, %p126
      %p128 = scmp.ne.s32.totalorder %s119, %s120
      %p129 = scmp.eq.s32.totalorder %s25, 0
      %p130 = por %p128, %p129
      %p131 = scmp.ne.s32.totalorder %s119, %s120
      %p132 = scmp.eq.s32.totalorder %s26, 1
      %p133 = por %p131, %p132
      %p135 = scmp.ne.s32.totalorder %s120, %s134
      %p136 = scmp.eq.s32.totalorder %s26, 0
      %p137 = por %p135, %p136
      %s139 = sadd.s32 %s138, 1
      %p142 = scmp.eq.s32.totalorder %s20, 1
      %p143 = scmp.ne.s32.totalorder %s138, %s140
      %p144 = scmp.eq.s32.totalorder %s20, 0
      %p145 = por %p143, %p144
      %p146 = scmp.ne.s32.totalorder %s138, %s140
      %p147 = scmp.eq.s32.totalorder %s25, 1
      %p148 = por %p146, %p147
      %p149 = scmp.ne.s32.totalorder %s140, %s141
      %p150 = scmp.eq.s32.totalorder %s25, 0
      %p151 = por %p149, %p150
      %p152 = scmp.ne.s32.totalorder %s140, %s141
      %p153 = scmp.eq.s32.totalorder %s26, 1
      %p154 = por %p152, %p153
      %p156 = scmp.ne.s32.totalorder %s141, %s155
      %p157 = scmp.eq.s32.totalorder %s26, 0
      %p158 = por %p156, %p157
      %s160 = sadd.s32 %s159, 1
      %p163 = scmp.eq.s32.totalorder %s20, 1
      %p164 = scmp.ne.s32.totalorder %s159, %s161
      %p165 = scmp.eq.s32.totalorder %s20, 0
      %p166 = por %p164, %p165
      %p167 = scmp.ne.s32.totalorder %s159, %s161
      %p168 = scmp.eq.s32.totalorder %s25, 1
      %p169 = por %p167, %p168
      %p170 = scmp.ne.s32.totalorder %s161, %s162
      %p171 = scmp.eq.s32.totalorder %s25, 0
      %p172 = por %p170, %p171
      %p173 = scmp.ne.s32.totalorder %s161, %s162
      %p174 = scmp.eq.s32.totalorder %s26, 1
      %p175 = por %p173, %p174
      %p177 = scmp.ne.s32.totalorder %s162, %s176
      %p178 = scmp.eq.s32.totalorder %s26, 0
      %p179 = por %p177, %p178
      %s180 = ssub.s32 %s20, %s27
      %p181 = scmp.eq.s32.totalorder %s180, 0
      %s183 = sadd.s32 %s182, 1
      %s184 = scalar_select %p181, %s182, %s183
      %p187 = pneg %p181
      %p188 = scmp.eq.s32.totalorder %s20, 1
      %p189 = por %p187, %p188
      %p190 = scmp.ne.s32.totalorder %s182, %s185
      %p191 = scmp.eq.s32.totalorder %s20, 0
      %p192 = por %p190, %p191
      %p193 = scmp.ne.s32.totalorder %s182, %s185
      %p194 = scmp.eq.s32.totalorder %s25, 1
      %p195 = por %p193, %p194
      %p196 = scmp.ne.s32.totalorder %s185, %s186
      %p197 = scmp.eq.s32.totalorder %s25, 0
      %p198 = por %p196, %p197
      %p199 = scmp.ne.s32.totalorder %s185, %s186
      %p200 = scmp.eq.s32.totalorder %s26, 1
      %p201 = por %p199, %p200
      %p203 = scmp.ne.s32.totalorder %s186, %s202
      %p204 = scmp.eq.s32.totalorder %s26, 0
      %p205 = por %p203, %p204
      %p206 = scmp.le.s32.totalorder 1, %s20
      %p207 = scmp.lt.s32.totalorder %s20, 3
      %p208 = pnand %p206, %p207
      %p209 = pneg %p208
      // Predicated region
      $region9: #{tpu_custom_call.1} parent=5 // pred_check
        _
      $region10: #{tpu_custom_call.1} parent=5 // pred_check_branch
        %211 = sbr.rel (%p208) target = $region12
      $region11: #{tpu_custom_call.1} parent=5 // pred_region
        %s212 = ssub.s32 %s20, 1
        // Predicated region
        $region13: #{tpu_custom_call.1} parent=11 // pred_check
          %p213 = pneg %p67
        $region14: #{tpu_custom_call.1} parent=11 // pred_check_branch
          %215 = sbr.rel (%p213) target = $region16
        $region15: #{tpu_custom_call.1} parent=11 // pred_region
          %s217 = ssub.s32 2048, 2048
          %218 = vsyncadd [#allocation6], %s217
          %s219 = sshll.u32 [#allocation5], 4
          %s220 = int_to_ptr.vmem [resolvable:$true] %s219
          %225 = dma.hbm_to_vmem [thread:$0]  %s1, 2048, %s220, [#allocation6], 128, 128, 8
        $region16: #{tpu_custom_call.1} parent=11 // pred_fallthru
          _
        // Predicated region
        $region17: #{tpu_custom_call.1} parent=11 // pred_check
          %p226 = pneg %p88
        $region18: #{tpu_custom_call.1} parent=11 // pred_check_branch
          %228 = sbr.rel (%p226) target = $region20
        $region19: #{tpu_custom_call.1} parent=11 // pred_region
          _
        $region20: #{tpu_custom_call.1} parent=11 // pred_fallthru
          _
        // Predicated region
        $region21: #{tpu_custom_call.1} parent=11 // pred_check
          %p229 = pneg %p109
        $region22: #{tpu_custom_call.1} parent=11 // pred_check_branch
          %231 = sbr.rel (%p229) target = $region24
        $region23: #{tpu_custom_call.1} parent=11 // pred_region
          _
        $region24: #{tpu_custom_call.1} parent=11 // pred_fallthru
          _
        // Predicated region
        $region25: #{tpu_custom_call.1} parent=11 // pred_check
          %p232 = pneg %p130
        $region26: #{tpu_custom_call.1} parent=11 // pred_check_branch
          %234 = sbr.rel (%p232) target = $region28
        $region27: #{tpu_custom_call.1} parent=11 // pred_region
          _
        $region28: #{tpu_custom_call.1} parent=11 // pred_fallthru
          _
        // Predicated region
        $region29: #{tpu_custom_call.1} parent=11 // pred_check
          %p235 = pneg %p151
        $region30: #{tpu_custom_call.1} parent=11 // pred_check_branch
          %237 = sbr.rel (%p235) target = $region32
        $region31: #{tpu_custom_call.1} parent=11 // pred_region
          %s239 = ssub.s32 2048, 2048
          %240 = vsyncadd [#allocation6], %s239
          %s241 = sshll.u32 [#allocation7], 4
          %s242 = int_to_ptr.vmem [resolvable:$true] %s241
          %247 = dma.hbm_to_vmem [thread:$0]  %s5, 2048, %s242, [#allocation6], 64, 64, 4
        $region32: #{tpu_custom_call.1} parent=11 // pred_fallthru
          _
        // Predicated region
        $region33: #{tpu_custom_call.1} parent=11 // pred_check
          %p248 = pneg %p172
        $region34: #{tpu_custom_call.1} parent=11 // pred_check_branch
          %250 = sbr.rel (%p248) target = $region36
        $region35: #{tpu_custom_call.1} parent=11 // pred_region
          _
        $region36: #{tpu_custom_call.1} parent=11 // pred_fallthru
          _
      $region12: #{tpu_custom_call.1} parent=5 // pred_fallthru
        _
      %p251 = scmp.lt.s32.totalorder %s20, 2
      // Predicated region
      $region37: #{tpu_custom_call.1} parent=5 // pred_check
        %p252 = pneg %p251
      $region38: #{tpu_custom_call.1} parent=5 // pred_check_branch
        %254 = sbr.rel (%p252) target = $region40
      $region39: #{tpu_custom_call.1} parent=5 // pred_region
        // Predicated region
        $region41: #{tpu_custom_call.1} parent=39 // pred_check
          %p255 = pneg %p40
        $region42: #{tpu_custom_call.1} parent=39 // pred_check_branch
          %257 = sbr.rel (%p255) target = $region44
        $region43: #{tpu_custom_call.1} parent=39 // pred_region
          %s258 = sand.u32 %s30, 1
          %s259 = scalar_lea.sflag [#allocation3], %s258
          %s260 = sand.u32 %s30, 1
          %s261 = smul.addr %s260, 8
          %s262 = scalar_lea.vmem [#allocation2], %s261
          %s264 = ssub.s32 128, 128
          %265 = vsyncadd %s259, %s264
          %s266 = smul.addr %s20, 128
          %s267 = scalar_lea.hbm %s0, %s266
          %s269 = sshll.u32 %s262, 4
          %s270 = int_to_ptr.vmem [resolvable:$true] %s269
          %272 = dma.hbm_to_vmem [thread:$0]  %s267, 128, %s270, %s259
        $region44: #{tpu_custom_call.1} parent=39 // pred_fallthru
          _
      $region40: #{tpu_custom_call.1} parent=5 // pred_fallthru
        _
      %p273 = scmp.le.s32.totalorder 1, %s20
      %p274 = scmp.lt.s32.totalorder %s20, 3
      %p275 = pnand %p273, %p274
      %p276 = pneg %p275
      // Predicated region
      $region45: #{tpu_custom_call.1} parent=5 // pred_check
        _
      $region46: #{tpu_custom_call.1} parent=5 // pred_check_branch
        %278 = sbr.rel (%p275) target = $region48
      $region47: #{tpu_custom_call.1} parent=5 // pred_region
        %s279 = ssub.s32 %s20, 1
        %s280 = sand.u32 %s33, 1
        %s281 = scalar_lea.sflag [#allocation3], %s280
        %s282 = sand.u32 %s33, 1
        %s283 = smul.addr %s282, 8
        %s284 = scalar_lea.vmem [#allocation2], %s283
        // Predicated region
        $region49: #{tpu_custom_call.1} parent=47 // pred_check
          %p285 = pneg %p46
        $region50: #{tpu_custom_call.1} parent=47 // pred_check_branch
          %287 = sbr.rel (%p285) target = $region52
        $region51: #{tpu_custom_call.1} parent=47 // pred_region
          %288 = dma.done %s281, 128
        $region52: #{tpu_custom_call.1} parent=47 // pred_fallthru
          _
        // Predicated region
        $region53: #{tpu_custom_call.1} parent=47 // pred_check
          %p289 = pneg %p67
        $region54: #{tpu_custom_call.1} parent=47 // pred_check_branch
          %291 = sbr.rel (%p289) target = $region56
        $region55: #{tpu_custom_call.1} parent=47 // pred_region
          %292 = dma.done [#allocation6], 2048
        $region56: #{tpu_custom_call.1} parent=47 // pred_fallthru
          _
        // Predicated region
        $region57: #{tpu_custom_call.1} parent=47 // pred_check
          %p293 = pneg %p151
        $region58: #{tpu_custom_call.1} parent=47 // pred_check_branch
          %295 = sbr.rel (%p293) target = $region60
        $region59: #{tpu_custom_call.1} parent=47 // pred_region
          %296 = dma.done [#allocation6], 2048
        $region60: #{tpu_custom_call.1} parent=47 // pred_fallthru
          _
        %s297 = sand.u32 %s33, 1
        %s298 = scalar_lea.sflag [#allocation3], %s297
        %s299 = sand.u32 %s33, 1
        %s300 = smul.addr %s299, 8
        %s301 = scalar_lea.vmem [#allocation2], %s300
        %p302 = pneg %p46
        %p303 = pneg %p43
        %p304 = pneg %p67
        %p305 = pneg %p64
        %p306 = pneg %p88
        %p307 = pneg %p85
        %p308 = pneg %p109
        %p309 = pneg %p106
        %p310 = pneg %p130
        %p311 = pneg %p127
        %p312 = pneg %p151
        %p313 = pneg %p148
        %p314 = pneg %p172
        %p315 = pneg %p169
        %p316 = pneg %p198
        %p317 = pneg %p195
        %s318 = sand.u32 %s185, 1
        %s319 = scalar_lea.sflag [#allocation4], %s318
        %s320 = sand.u32 %s185, 1
        %s321 = smul.addr %s320, 8
        %s322 = scalar_lea.vmem [#allocation8], %s321
        %v328 = vld [vmem:[%s284] sm:$0xff]
        %v329 = vpack.c.bf16 %v328, %v328
        %v330 = vld [vmem:[#allocation5] sm:$0xff]
        %v331 = vld [vmem:[#allocation5 + $0x8] sm:$0xff]
        %v332 = vld [vmem:[#allocation5 + $0x10] sm:$0xff]
        %v333 = vld [vmem:[#allocation5 + $0x18] sm:$0xff]
        %v334 = vld [vmem:[#allocation5 + $0x20] sm:$0xff]
        %v335 = vld [vmem:[#allocation5 + $0x28] sm:$0xff]
        %v336 = vld [vmem:[#allocation5 + $0x30] sm:$0xff]
        %v337 = vld [vmem:[#allocation5 + $0x38] sm:$0xff]
        %v338 = vld [vmem:[#allocation5 + $0x40] sm:$0xff]
        %v339 = vld [vmem:[#allocation5 + $0x48] sm:$0xff]
        %v340 = vld [vmem:[#allocation5 + $0x50] sm:$0xff]
        %v341 = vld [vmem:[#allocation5 + $0x58] sm:$0xff]
        %v342 = vld [vmem:[#allocation5 + $0x60] sm:$0xff]
        %v343 = vld [vmem:[#allocation5 + $0x68] sm:$0xff]
        %v344 = vld [vmem:[#allocation5 + $0x70] sm:$0xff]
        %v345 = vld [vmem:[#allocation5 + $0x78] sm:$0xff]
        %v346 = vld [vmem:[%s2] sm:$0x3]
        %v348 = vlaneseq
        %v349 = vshrl.u32 %v348, 7
        %v350 = vsub.s32 0, %v349
        %v351 = vrot.slane %v346, %v350
        %v352 = vlaneseq
        %v353 = vshrl.u32 %v352, 7
        %v354 = vsub.s32 1, %v353
        %v355 = vrot.slane %v346, %v354
        %v374 = vunpack.c.l.b16 %v330
        %v375 = vunpack.c.h.b16 %v330
        %v376 = vunpack.c.l.b16 %v331
        %v377 = vunpack.c.h.b16 %v331
        %v378 = vunpack.c.l.b16 %v332
        %v379 = vunpack.c.h.b16 %v332
        %v380 = vunpack.c.l.b16 %v333
        %v381 = vunpack.c.h.b16 %v333
        %v382 = vunpack.c.l.b16 %v334
        %v383 = vunpack.c.h.b16 %v334
        %v384 = vunpack.c.l.b16 %v335
        %v385 = vunpack.c.h.b16 %v335
        %v386 = vunpack.c.l.b16 %v336
        %v387 = vunpack.c.h.b16 %v336
        %v388 = vunpack.c.l.b16 %v337
        %v389 = vunpack.c.h.b16 %v337
        %v390 = vunpack.c.l.b16 %v338
        %v391 = vunpack.c.h.b16 %v338
        %v392 = vunpack.c.l.b16 %v339
        %v393 = vunpack.c.h.b16 %v339
        %v394 = vunpack.c.l.b16 %v340
        %v395 = vunpack.c.h.b16 %v340
        %v396 = vunpack.c.l.b16 %v341
        %v397 = vunpack.c.h.b16 %v341
        %v398 = vunpack.c.l.b16 %v342
        %v399 = vunpack.c.h.b16 %v342
        %v400 = vunpack.c.l.b16 %v343
        %v401 = vunpack.c.h.b16 %v343
        %v402 = vunpack.c.l.b16 %v344
        %v403 = vunpack.c.h.b16 %v344
        %v404 = vunpack.c.l.b16 %v345
        %v405 = vunpack.c.h.b16 %v345
        %v406 = vpack.c.b16 %v376, %v374
        %v407 = vpack.c.b16 %v377, %v375
        %v408 = vpack.c.b16 %v380, %v378
        %v409 = vpack.c.b16 %v381, %v379
        %v410 = vpack.c.b16 %v384, %v382
        %v411 = vpack.c.b16 %v385, %v383
        %v412 = vpack.c.b16 %v388, %v386
        %v413 = vpack.c.b16 %v389, %v387
        %v414 = vpack.c.b16 %v392, %v390
        %v415 = vpack.c.b16 %v393, %v391
        %v416 = vpack.c.b16 %v396, %v394
        %v417 = vpack.c.b16 %v397, %v395
        %v418 = vpack.c.b16 %v400, %v398
        %v419 = vpack.c.b16 %v401, %v399
        %v420 = vpack.c.b16 %v404, %v402
        %v421 = vpack.c.b16 %v405, %v403
        %438 = vmatprep.subr.bf16.mxu0 %v421
        %439 = vmatpush1.bf16.msra.mxu0 %v420
        %440 = vmatprep.subr.bf16.mxu0 %v419
        %441 = vmatpush1.bf16.msra.mxu0 %v418
        %442 = vmatprep.subr.bf16.mxu0 %v417
        %443 = vmatpush1.bf16.msra.mxu0 %v416
        %444 = vmatprep.subr.bf16.mxu0 %v415
        %445 = vmatpush1.bf16.msra.mxu0 %v414
        %446 = vmatprep.subr.bf16.mxu0 %v413
        %447 = vmatpush1.bf16.msra.mxu0 %v412
        %448 = vmatprep.subr.bf16.mxu0 %v411
        %449 = vmatpush1.bf16.msra.mxu0 %v410
        %450 = vmatprep.subr.bf16.mxu0 %v409
        %451 = vmatpush1.bf16.msra.mxu0 %v408
        %452 = vmatprep.subr.bf16.mxu0 %v407
        %453 = vmatpush1.bf16.msra.mxu0 %v406
        %454 = vmatprep.subr.bf16.mxu0 0
        %455 = vmatpush2.bf16.msra.mxu0 0
        %456 = vmatprep.subr.bf16.mxu0 0
        %457 = vmatpush2.bf16.msra.mxu0 0
        %458 = vmatprep.subr.bf16.mxu0 0
        %459 = vmatpush2.bf16.msra.mxu0 0
        %460 = vmatprep.subr.bf16.mxu0 0
        %461 = vmatpush2.bf16.msra.mxu0 0
        %462 = vmatprep.subr.bf16.mxu0 0
        %463 = vmatpush2.bf16.msra.mxu0 0
        %464 = vmatprep.subr.bf16.mxu0 0
        %465 = vmatpush2.bf16.msra.mxu0 0
        %466 = vmatprep.subr.bf16.mxu0 0
        %467 = vmatpush2.bf16.msra.mxu0 0
        %468 = vmatprep.subr.bf16.mxu0 0
        %469 = vmatpush2.bf16.msra.mxu0 0
        %470 = vmatprep.mubr.bf16.mxu0 0
        %471 = vmatmul.mubr.bf16.gmra.mxu0 %v329
        %v472 = vpop.f32.mrf.mxu0
        %v473 = vadd.f32 %v351, %v472
        %v474 = vpop.f32.mrf.mxu0
        %v475 = vadd.f32 %v355, %v474
        %v476 = vpop.f32.mrf.mxu0
        %v477 = vpop.f32.mrf.mxu0
        %478 = vdwg.mxu0
        %v479 = vadd.f32 %v473, %v475
        %480 = vadd.xlane.f32.xlu0 %v479
        %v481 = vpop.xlane.xlu0 %480
        %v482 = vmul.f32 %v481, 0.00390625
        %v483 = vmul.f32 %v473, %v473
        %v484 = vmul.f32 %v475, %v475
        %v485 = vadd.f32 %v483, %v484
        %486 = vadd.xlane.f32.xlu0 %v485
        %v487 = vpop.xlane.xlu0 %486
        %v488 = vmul.f32 %v487, 0.00390625
        %v489 = vmul.f32 %v482, %v482
        %v490 = vsub.f32 %v488, %v489
        %v491 = vmax.f32 %v490, 0.0
        %v492 = vadd.f32 %v491, 1e-05
        %v493 = vrsqrt.pop %v492
        %v494 = vsub.f32 %v473, %v482
        %v495 = vsub.f32 %v475, %v482
        %v496 = vmul.f32 %v494, %v493
        %v497 = vmul.f32 %v495, %v493
        %v498 = vpack.c.bf16 %v496, %v496
        %v499 = vpack.c.bf16 %v497, %v497
        %v500 = vld [vmem:[%s3] sm:$0x3]
        %v502 = vlaneseq
        %v503 = vshrl.u32 %v502, 7
        %v504 = vsub.s32 0, %v503
        %v505 = vrot.slane %v500, %v504
        %v506 = vlaneseq
        %v507 = vshrl.u32 %v506, 7
        %v508 = vsub.s32 1, %v507
        %v509 = vrot.slane %v500, %v508
        %v512 = vpack.c.bf16 %v505, %v505
        %v513 = vpack.c.bf16 %v509, %v509
        %v515 = vpack.i.b16 %v512, %v512
        %v517 = vlaneseq
        %v518 = vshrl.u32 %v517, 7
        %v519 = vsub.s32 0, %v518
        %v520 = vrot.slane %v515, %v519
        %v522 = vpack.i.b16 %v513, %v513
        %v524 = vlaneseq
        %v525 = vshrl.u32 %v524, 7
        %v526 = vsub.s32 0, %v525
        %v527 = vrot.slane %v522, %v526
        %v528 = vmul.bf16 %v498, %v520
        %v529 = vmul.bf16 %v499, %v527
        %v530 = vld [vmem:[%s4] sm:$0x3]
        %v532 = vlaneseq
        %v533 = vshrl.u32 %v532, 7
        %v534 = vsub.s32 0, %v533
        %v535 = vrot.slane %v530, %v534
        %v536 = vlaneseq
        %v537 = vshrl.u32 %v536, 7
        %v538 = vsub.s32 1, %v537
        %v539 = vrot.slane %v530, %v538
        %v542 = vpack.c.bf16 %v535, %v535
        %v543 = vpack.c.bf16 %v539, %v539
        %v545 = vpack.i.b16 %v542, %v542
        %v547 = vlaneseq
        %v548 = vshrl.u32 %v547, 7
        %v549 = vsub.s32 0, %v548
        %v550 = vrot.slane %v545, %v549
        %v552 = vpack.i.b16 %v543, %v543
        %v554 = vlaneseq
        %v555 = vshrl.u32 %v554, 7
        %v556 = vsub.s32 0, %v555
        %v557 = vrot.slane %v552, %v556
        %v558 = vadd.bf16 %v528, %v550
        %v559 = vadd.bf16 %v529, %v557
        %v560 = vmul.bf16 %v558, 1056980736
        %v561 = vmul.bf16 %v559, 1056980736
        %v562 = vmul.bf16 %v558, 1061961548
        %v563 = vmul.bf16 %v559, 1061961548
        %v564 = vmul.bf16 %v558, 1027030327
        %v565 = vmul.bf16 %v559, 1027030327
        %v566 = vmul.bf16 %v564, %v558
        %v567 = vmul.bf16 %v565, %v559
        %v568 = vadd.bf16 %v566, 1065369472
        %v569 = vadd.bf16 %v567, 1065369472
        %v570 = vmul.bf16 %v562, %v568
        %v571 = vmul.bf16 %v563, %v569
        %v572 = vtanh.bf16.pop %v570
        %v573 = vtanh.bf16.pop %v571
        %v574 = vadd.bf16 %v572, 1065369472
        %v575 = vadd.bf16 %v573, 1065369472
        %v576 = vmul.bf16 %v560, %v574
        %v577 = vmul.bf16 %v561, %v575
        %v578 = vld [vmem:[#allocation7] sm:$0xf]
        %v579 = vld [vmem:[#allocation7 + $0x4] sm:$0xf]
        %v580 = vld [vmem:[#allocation7 + $0x8] sm:$0xf]
        %v581 = vld [vmem:[#allocation7 + $0xc] sm:$0xf]
        %v582 = vld [vmem:[#allocation7 + $0x10] sm:$0xf]
        %v583 = vld [vmem:[#allocation7 + $0x14] sm:$0xf]
        %v584 = vld [vmem:[#allocation7 + $0x18] sm:$0xf]
        %v585 = vld [vmem:[#allocation7 + $0x1c] sm:$0xf]
        %v586 = vld [vmem:[#allocation7 + $0x20] sm:$0xf]
        %v587 = vld [vmem:[#allocation7 + $0x24] sm:$0xf]
        %v588 = vld [vmem:[#allocation7 + $0x28] sm:$0xf]
        %v589 = vld [vmem:[#allocation7 + $0x2c] sm:$0xf]
        %v590 = vld [vmem:[#allocation7 + $0x30] sm:$0xf]
        %v591 = vld [vmem:[#allocation7 + $0x34] sm:$0xf]
        %v592 = vld [vmem:[#allocation7 + $0x38] sm:$0xf]
        %v593 = vld [vmem:[#allocation7 + $0x3c] sm:$0xf]
        %v594 = vld [vmem:[#allocation7 + $0x40] sm:$0xf]
        %v595 = vld [vmem:[#allocation7 + $0x44] sm:$0xf]
        %v596 = vld [vmem:[#allocation7 + $0x48] sm:$0xf]
        %v597 = vld [vmem:[#allocation7 + $0x4c] sm:$0xf]
        %v598 = vld [vmem:[#allocation7 + $0x50] sm:$0xf]
        %v599 = vld [vmem:[#allocation7 + $0x54] sm:$0xf]
        %v600 = vld [vmem:[#allocation7 + $0x58] sm:$0xf]
        %v601 = vld [vmem:[#allocation7 + $0x5c] sm:$0xf]
        %v602 = vld [vmem:[#allocation7 + $0x60] sm:$0xf]
        %v603 = vld [vmem:[#allocation7 + $0x64] sm:$0xf]
        %v604 = vld [vmem:[#allocation7 + $0x68] sm:$0xf]
        %v605 = vld [vmem:[#allocation7 + $0x6c] sm:$0xf]
        %v606 = vld [vmem:[#allocation7 + $0x70] sm:$0xf]
        %v607 = vld [vmem:[#allocation7 + $0x74] sm:$0xf]
        %v608 = vld [vmem:[#allocation7 + $0x78] sm:$0xf]
        %v609 = vld [vmem:[#allocation7 + $0x7c] sm:$0xf]
        %v610 = vld [vmem:[%s6] sm:$0x1]
        %v612 = vlaneseq
        %v613 = vshrl.u32 %v612, 7
        %v614 = vsub.s32 0, %v613
        %v615 = vrot.slane %v610, %v614
        %v649 = vunpack.c.l.b16 %v578
        %v650 = vunpack.c.l.b16 %v579
        %v651 = vunpack.c.l.b16 %v580
        %v652 = vunpack.c.l.b16 %v581
        %v653 = vunpack.c.l.b16 %v582
        %v654 = vunpack.c.l.b16 %v583
        %v655 = vunpack.c.l.b16 %v584
        %v656 = vunpack.c.l.b16 %v585
        %v657 = vunpack.c.l.b16 %v586
        %v658 = vunpack.c.l.b16 %v587
        %v659 = vunpack.c.l.b16 %v588
        %v660 = vunpack.c.l.b16 %v589
        %v661 = vunpack.c.l.b16 %v590
        %v662 = vunpack.c.l.b16 %v591
        %v663 = vunpack.c.l.b16 %v592
        %v664 = vunpack.c.l.b16 %v593
        %v665 = vunpack.c.l.b16 %v594
        %v666 = vunpack.c.l.b16 %v595
        %v667 = vunpack.c.l.b16 %v596
        %v668 = vunpack.c.l.b16 %v597
        %v669 = vunpack.c.l.b16 %v598
        %v670 = vunpack.c.l.b16 %v599
        %v671 = vunpack.c.l.b16 %v600
        %v672 = vunpack.c.l.b16 %v601
        %v673 = vunpack.c.l.b16 %v602
        %v674 = vunpack.c.l.b16 %v603
        %v675 = vunpack.c.l.b16 %v604
        %v676 = vunpack.c.l.b16 %v605
        %v677 = vunpack.c.l.b16 %v606
        %v678 = vunpack.c.l.b16 %v607
        %v679 = vunpack.c.l.b16 %v608
        %v680 = vunpack.c.l.b16 %v609
        %v681 = vpack.c.b16 %v650, %v649
        %v682 = vpack.c.b16 %v652, %v651
        %v683 = vpack.c.b16 %v654, %v653
        %v684 = vpack.c.b16 %v656, %v655
        %v685 = vpack.c.b16 %v658, %v657
        %v686 = vpack.c.b16 %v660, %v659
        %v687 = vpack.c.b16 %v662, %v661
        %v688 = vpack.c.b16 %v664, %v663
        %v689 = vpack.c.b16 %v666, %v665
        %v690 = vpack.c.b16 %v668, %v667
        %v691 = vpack.c.b16 %v670, %v669
        %v692 = vpack.c.b16 %v672, %v671
        %v693 = vpack.c.b16 %v674, %v673
        %v694 = vpack.c.b16 %v676, %v675
        %v695 = vpack.c.b16 %v678, %v677
        %v696 = vpack.c.b16 %v680, %v679
        %713 = vmatprep.subr.bf16.mxu0 0
        %714 = vmatpush1.bf16.msra.mxu0 %v688
        %715 = vmatprep.subr.bf16.mxu0 0
        %716 = vmatpush1.bf16.msra.mxu0 %v687
        %717 = vmatprep.subr.bf16.mxu0 0
        %718 = vmatpush1.bf16.msra.mxu0 %v686
        %719 = vmatprep.subr.bf16.mxu0 0
        %720 = vmatpush1.bf16.msra.mxu0 %v685
        %721 = vmatprep.subr.bf16.mxu0 0
        %722 = vmatpush1.bf16.msra.mxu0 %v684
        %723 = vmatprep.subr.bf16.mxu0 0
        %724 = vmatpush1.bf16.msra.mxu0 %v683
        %725 = vmatprep.subr.bf16.mxu0 0
        %726 = vmatpush1.bf16.msra.mxu0 %v682
        %727 = vmatprep.subr.bf16.mxu0 0
        %728 = vmatpush1.bf16.msra.mxu0 %v681
        %729 = vmatprep.subr.bf16.mxu0 0
        %730 = vmatpush2.bf16.msra.mxu0 %v696
        %731 = vmatprep.subr.bf16.mxu0 0
        %732 = vmatpush2.bf16.msra.mxu0 %v695
        %733 = vmatprep.subr.bf16.mxu0 0
        %734 = vmatpush2.bf16.msra.mxu0 %v694
        %735 = vmatprep.subr.bf16.mxu0 0
        %736 = vmatpush2.bf16.msra.mxu0 %v693
        %737 = vmatprep.subr.bf16.mxu0 0
        %738 = vmatpush2.bf16.msra.mxu0 %v692
        %739 = vmatprep.subr.bf16.mxu0 0
        %740 = vmatpush2.bf16.msra.mxu0 %v691
        %741 = vmatprep.subr.bf16.mxu0 0
        %742 = vmatpush2.bf16.msra.mxu0 %v690
        %743 = vmatprep.subr.bf16.mxu0 0
        %744 = vmatpush2.bf16.msra.mxu0 %v689
        %745 = vmatprep.mubr.bf16.mxu0 %v577
        %746 = vmatmul.mubr.bf16.gmra.mxu0 %v576
        %v747 = vpop.f32.mrf.mxu0
        %v748 = vadd.f32 %v615, %v747
        %v749 = vpop.f32.mrf.mxu0
        %v750 = vpop.f32.mrf.mxu0
        %v751 = vpop.f32.mrf.mxu0
        %752 = vdwg.mxu0
        %753 = vst [vmem:[%s322] sm:$0xff] %v748
        %s754 = sand.u32 %s185, 1
        %s755 = scalar_lea.sflag [#allocation4], %s754
        %s756 = sand.u32 %s185, 1
        %s757 = smul.addr %s756, 8
        %s758 = scalar_lea.vmem [#allocation8], %s757
        // Predicated region
        $region61: #{tpu_custom_call.1} parent=47 // pred_check
          %p759 = pneg %p195
        $region62: #{tpu_custom_call.1} parent=47 // pred_check_branch
          %761 = sbr.rel (%p759) target = $region64
        $region63: #{tpu_custom_call.1} parent=47 // pred_region
          %s763 = ssub.s32 128, 128
          %764 = vsyncadd %s755, %s763
          %s765 = smul.addr %s25, 128
          %s766 = scalar_lea.hbm %s7, %s765
          %s768 = sshll.u32 %s758, 4
          %s769 = int_to_ptr.vmem [resolvable:$true] %s768
          %771 = dma.vmem_to_hbm [thread:$0]  %s769, 128, %s766, %s755
        $region64: #{tpu_custom_call.1} parent=47 // pred_fallthru
          _
      $region48: #{tpu_custom_call.1} parent=5 // pred_fallthru
        _
      %p772 = scmp.le.s32.totalorder 2, %s20
      // Predicated region
      $region65: #{tpu_custom_call.1} parent=5 // pred_check
        %p773 = pneg %p772
      $region66: #{tpu_custom_call.1} parent=5 // pred_check_branch
        %775 = sbr.rel (%p773) target = $region68
      $region67: #{tpu_custom_call.1} parent=5 // pred_region
        %s776 = ssub.s32 %s20, 2
        // Predicated region
        $region69: #{tpu_custom_call.1} parent=67 // pred_check
          %p777 = pneg %p201
        $region70: #{tpu_custom_call.1} parent=67 // pred_check_branch
          %779 = sbr.rel (%p777) target = $region72
        $region71: #{tpu_custom_call.1} parent=67 // pred_region
          %s780 = sand.u32 %s186, 1
          %s781 = scalar_lea.sflag [#allocation4], %s780
          %s782 = sand.u32 %s186, 1
          %s783 = smul.addr %s782, 8
          %s784 = scalar_lea.vmem [#allocation8], %s783
          %785 = dma.done %s781, 128
        $region72: #{tpu_custom_call.1} parent=67 // pred_fallthru
          _
      $region68: #{tpu_custom_call.1} parent=5 // pred_fallthru
        _
    $region6: #{tpu_custom_call.1} parent=1 // loop_footer
      %s24 = sadd.s32 1, %s20
    $region7: #{tpu_custom_call.1} parent=1 // loop_footer_branch
      %19 = sbr.rel target = $region3
    $region8: #{tpu_custom_call.1} parent=1 // loop_exit
      _
    %786 = vsyncpa [#allocation3], 1
    %s787 = scalar_lea.sflag [#allocation3], 1
    %788 = vsyncpa %s787, 1
    %789 = vsyncpa [#allocation6], 1
    %790 = vsyncpa [#allocation4], 1
    %s791 = scalar_lea.sflag [#allocation4], 1
    %792 = vsyncpa %s791, 1

</llo_original>
